<compile_context>
chip_gen: v6e
topology: v6e:2x2x1
jax: 0.10.0
libtpu: 0.0.40
codegen_flags: <defaults>
</compile_context>

<pallas_src>
import functools

import jax
import jax.numpy as jnp
import numpy as np
from jax.experimental import pallas as pl
from jax.experimental.pallas import tpu as pltpu


# ------------------------------------------------------------------ kernel ---

def _make_rtlstm_kernel(L, H, B, O_pad, T):
    H4 = 4 * H

    def kernel(len_ref, g0_ref, w_hh_ref, w_ih_rest_ref, b_rest_ref,
               w_fc_ref, b_fc_ref, out_ref):
        lens = len_ref[...]                                   # (B, 1) int32, loaded once

        # Static lane mask for the 'g' (tanh) gate lanes [2H, 3H). Gate order is i,f,g,o.
        lane = jax.lax.broadcasted_iota(jnp.int32, (B, H4), 1)
        g_lane = jnp.logical_and(lane >= 2 * H, lane < 3 * H)

        # Weights / biases loaded and pre-broadcast once, hoisted out of the recurrence.
        w_hh = [w_hh_ref[l] for l in range(L)]                # each (H, 4H), gate-scaled
        w_ih = [w_ih_rest_ref[l] for l in range(L - 1)]       # each (H, 4H), gate-scaled
        b_rest = [jnp.broadcast_to(b_rest_ref[l], (B, H4)) for l in range(L - 1)]

        def cell(gates_scaled, h_old, c_old, mask_bh):
            # Single EUP pass over the whole (B,4H) gate vreg; the 0.5 pre-scale of the
            # tanh-identity sigmoid is already folded into the weights / biases / g0.
            t_all = jnp.tanh(gates_scaled)
            act = jnp.where(g_lane, t_all, 0.5 * t_all + 0.5)   # i,f,o: sigmoid; g: tanh
            i_g = act[:, 0 * H:1 * H]
            f_g = act[:, 1 * H:2 * H]
            g_g = act[:, 2 * H:3 * H]
            o_g = act[:, 3 * H:4 * H]
            c_new = f_g * c_old + i_g * g_g
            h_new = o_g * jnp.tanh(c_new)
            # packed-sequence semantics: state only advances on valid timesteps.
            h_upd = jnp.where(mask_bh, h_new, h_old)
            c_upd = jnp.where(mask_bh, c_new, c_old)
            return h_upd, c_upd

        def step(t, carry):
            h, c = carry                                      # tuples of L x (B, H)
            # One mask broadcast per timestep, reused by every layer / select.
            mask_bh = jnp.broadcast_to(t < lens, (B, H))

            # ---- layer 0: input projection precomputed for all T; only h @ W_hh here ----
            gates0 = g0_ref[t] + jnp.dot(h[0], w_hh[0],
                                         preferred_element_type=jnp.float32)
            h0, c0 = cell(gates0, h[0], c[0], mask_bh)
            new_h = [h0]
            new_c = [c0]

            layer_in = h0
            for l in range(1, L):                             # static unroll over layers
                # Two matmuls whose MXU pushes overlap (no cross-lane concat on the
                # serial path).
                gates = (jnp.dot(layer_in, w_ih[l - 1],
                                 preferred_element_type=jnp.float32)
                         + jnp.dot(h[l], w_hh[l],
                                   preferred_element_type=jnp.float32)
                         + b_rest[l - 1])
                hl, cl = cell(gates, h[l], c[l], mask_bh)
                new_h.append(hl)
                new_c.append(cl)
                layer_in = hl

            return tuple(new_h), tuple(new_c)

        zeros = tuple(jnp.zeros((B, H), jnp.float32) for _ in range(L))
        # Static, fully-unrolled time loop.  Masking makes steps past each sequence's
        # length exact no-ops, so running all T steps is correct; unrolling exposes the
        # (layer, time) wavefront to the scheduler.
        h_fin, _ = jax.lax.fori_loop(0, T, step, (zeros, zeros), unroll=True)

        # fc(relu(h_t[-1])) fused at the end; output is lane-dense (O padded to 128).
        out = jnp.dot(jnp.maximum(h_fin[L - 1], 0.0), w_fc_ref[...],
                      preferred_element_type=jnp.float32) + b_fc_ref[...]
        out_ref[...] = out.astype(out_ref.dtype)

    return kernel


# ------------------------------------------------------- one-time weight prep ---

def prepare_params(params, *, num_layers, hidden, out_size):
    """One-time weight preparation (outside jit / the per-call forward):
       * fold the tanh-identity sigmoid pre-scale (0.5 on i/f/o gate lanes, 1.0 on g)
         into every gate weight and bias,
       * pad the fc weights/bias to a lane-dense 128-wide output,
       * keep layers>0 input/recurrent weights separate (two overlapping matmuls)."""
    L, H, O = num_layers, hidden, out_size
    H4 = 4 * H
    lane = np.arange(H4)
    gate_scale = jnp.asarray(
        np.where((lane >= 2 * H) & (lane < 3 * H), 1.0, 0.5), dtype=jnp.float32)  # (4H,)

    O_pad = max(128, ((O + 127) // 128) * 128)
    b = params["b"]                                           # (L, 1, 4H) = b_ih + b_hh

    prepped = {
        "embedding": params["embedding"],                     # (V, E), padding row zero
        "w_ih0_s": params["w_ih0"] * gate_scale,              # (E, 4H)
        "b0_s": b[0] * gate_scale,                            # (1, 4H)
        "w_hh_s": params["w_hh"] * gate_scale,                # (L, H, 4H)
        "w_fc_pad": jnp.pad(params["w_fc"], ((0, 0), (0, O_pad - O))),   # (H, O_pad)
        "b_fc_pad": jnp.pad(params["b_fc"], ((0, 0), (0, O_pad - O))),   # (1, O_pad)
    }
    if L > 1:
        prepped["w_ih_rest_s"] = params["w_ih_rest"][:L - 1] * gate_scale  # (L-1, H, 4H)
        prepped["b_rest_s"] = b[1:] * gate_scale                            # (L-1, 1, 4H)
    else:
        prepped["w_ih_rest_s"] = jnp.zeros((1, H, H4), jnp.float32)  # unused placeholders
        prepped["b_rest_s"] = jnp.zeros((1, 1, H4), jnp.float32)
    return prepped


# ------------------------------------------------------------------ forward ---

def rtlstm_forward(tokens, lengths, prepped, *, num_layers, hidden, out_size):
    """tokens: (B, T) int32, lengths: (B,) int32 (sorted descending)."""
    emb_table = prepped["embedding"]                    # (V, E)
    B, T = tokens.shape
    H = hidden
    L = num_layers
    O = out_size
    O_pad = prepped["w_fc_pad"].shape[1]

    # Sublane padding (f32 tile is (8, 128)).
    B_pad = max(8, ((B + 7) // 8) * 8)

    # --- glue: embedding lookup + layer-0 input projection for ALL timesteps (already
    #     carrying the folded tanh-identity gate scale) -------------------------------
    x_emb = emb_table[tokens]                           # (B, T, E)
    x_tm = jnp.transpose(x_emb, (1, 0, 2))              # (T, B, E) time-major
    x_tm = jnp.pad(x_tm, ((0, 0), (0, B_pad - B), (0, 0)))

    lens = lengths.astype(jnp.int32)
    lens_pad = jnp.pad(lens, (0, B_pad - B)).reshape(B_pad, 1)   # padded rows: length 0

    g0 = jnp.einsum("tbe,ef->tbf", x_tm, prepped["w_ih0_s"],
                    preferred_element_type=jnp.float32) + prepped["b0_s"]  # (T, B_pad, 4H)

    kernel = _make_rtlstm_kernel(L, H, B_pad, O_pad, T)

    def full(arr):
        nd = arr.ndim
        return pl.BlockSpec(arr.shape, lambda i, _nd=nd: (0,) * _nd)

    out_pad = pl.pallas_call(
        kernel,
        out_shape=jax.ShapeDtypeStruct((B_pad, O_pad), jnp.float32),
        grid_spec=pltpu.PrefetchScalarGridSpec(
            num_scalar_prefetch=0,
            grid=(1,),                          # single invocation; time loop is internal
            in_specs=[
                full(lens_pad),                 # (B_pad, 1) int32
                full(g0),                       # (T, B_pad, 4H)
                full(prepped["w_hh_s"]),        # (L, H, 4H)
                full(prepped["w_ih_rest_s"]),   # (max(L-1,1), H, 4H)
                full(prepped["b_rest_s"]),      # (max(L-1,1), 1, 4H)
                full(prepped["w_fc_pad"]),      # (H, O_pad)
                full(prepped["b_fc_pad"]),      # (1, O_pad)
            ],
            out_specs=pl.BlockSpec((B_pad, O_pad), lambda i: (0, 0)),
        ),
        compiler_params=pltpu.CompilerParams(
            dimension_semantics=("arbitrary",),
            # Explicit scoped-VMEM budget: keeps the whole-sequence-resident g0 design
            # compiling past v5e's 16 MiB default as T/B/H scale (operands here are tiny).
            vmem_limit_bytes=32 * 1024 * 1024,
        ),
    )(lens_pad, g0, prepped["w_hh_s"], prepped["w_ih_rest_s"],
      prepped["b_rest_s"], prepped["w_fc_pad"], prepped["b_fc_pad"])

    return out_pad[:B, :O]


# ----------------------------------------------------------- pure-JAX ref ----

def rtlstm_reference(tokens, lengths, params, *, num_layers, hidden, out_size):
    emb = params["embedding"][tokens]                   # (B, T, E)
    B, T, E = emb.shape
    L, H = num_layers, hidden
    h = jnp.zeros((L, B, H), jnp.float32)
    c = jnp.zeros((L, B, H), jnp.float32)
    for t in range(T):
        mask = (t < lengths)[:, None]
        layer_in = emb[:, t, :]
        for l in range(L):
            w_ih = params["w_ih0"] if l == 0 else params["w_ih_rest"][l - 1]
            gates = layer_in @ w_ih + h[l] @ params["w_hh"][l] + params["b"][l]
            i_g = jax.nn.sigmoid(gates[:, 0 * H:1 * H])
            f_g = jax.nn.sigmoid(gates[:, 1 * H:2 * H])
            g_g = jnp.tanh(gates[:, 2 * H:3 * H])
            o_g = jax.nn.sigmoid(gates[:, 3 * H:4 * H])
            c_new = f_g * c[l] + i_g * g_g
            h_new = o_g * jnp.tanh(c_new)
            h = h.at[l].set(jnp.where(mask, h_new, h[l]))
            c = c.at[l].set(jnp.where(mask, c_new, c[l]))
            layer_in = h[l]
    return jnp.maximum(h[L - 1], 0.0) @ params["w_fc"] + params["b_fc"]


# -------------------------------------------------------------------- main ---

if __name__ == "__main__":
    # Small, module-consistent sizes.
    VOCAB = {"-": 0, "a": 1, "b": 2, "c": 3, "d": 4, "e": 5, "f": 6, "g": 7}
    V = len(VOCAB)
    PAD = VOCAB["-"]
    E = 16          # embedding_dim
    H = 32          # num_lstm_units
    L = 2           # num_layers
    O = 1           # output_size
    B = 2           # batch
    T = 8           # seq length

    key = jax.random.PRNGKey(0)
    keys = jax.random.split(key, 10)

    scale = 0.1
    embedding = scale * jax.random.normal(keys[0], (V, E), jnp.float32)
    embedding = embedding.at[PAD].set(0.0)              # padding_idx row is zero

    w_ih0 = scale * jax.random.normal(keys[1], (E, 4 * H), jnp.float32)
    w_ih_rest = scale * jax.random.normal(keys[2], (max(L - 1, 1), H, 4 * H), jnp.float32)
    w_hh = scale * jax.random.normal(keys[3], (L, H, 4 * H), jnp.float32)
    b_ih = scale * jax.random.normal(keys[4], (L, 1, 4 * H), jnp.float32)
    b_hh = scale * jax.random.normal(keys[5], (L, 1, 4 * H), jnp.float32)
    w_fc = scale * jax.random.normal(keys[6], (H, O), jnp.float32)
    b_fc = scale * jax.random.normal(keys[7], (1, O), jnp.float32)

    params = {
        "embedding": embedding,
        "w_ih0": w_ih0,
        "w_ih_rest": w_ih_rest,
        "w_hh": w_hh,
        "b": b_ih + b_hh,       # PyTorch adds both biases
        "w_fc": w_fc,
        "b_fc": b_fc,
    }

    # One-time weight prep (gate pre-scale folding, fc padding) outside jit.
    prepped = prepare_params(params, num_layers=L, hidden=H, out_size=O)

    # pack_padded_sequence(enforce_sorted=True) requires descending lengths.
    lengths = jnp.array([8, 5], dtype=jnp.int32)        # (B,)
    tok = jax.random.randint(keys[8], (B, T), 1, V, dtype=jnp.int32)
    pos = jnp.arange(T)[None, :]
    tokens = jnp.where(pos < lengths[:, None], tok, PAD)  # padded with '-'

    fwd = functools.partial(rtlstm_forward, num_layers=L, hidden=H, out_size=O)
    out = jax.jit(fwd)(tokens, lengths, prepped)
    out = jax.block_until_ready(out)

    ref = rtlstm_reference(tokens, lengths, params,
                           num_layers=L, hidden=H, out_size=O)
    np.testing.assert_allclose(np.asarray(out), np.asarray(ref),
                               rtol=1e-4, atol=1e-4)

    print("KERNEL_OK")
</pallas_src>

<mosaic_0001>
module attributes {stable_mosaic.version = 11 : i64} {
  func.func @kernel(%arg0: i32, %arg1: memref<8x1xi32, #tpu.memory_space<vmem>>, %arg2: memref<8x8x128xf32, #tpu.memory_space<vmem>>, %arg3: memref<2x32x128xf32, #tpu.memory_space<vmem>>, %arg4: memref<1x32x128xf32, #tpu.memory_space<vmem>>, %arg5: memref<1x1x128xf32, #tpu.memory_space<vmem>>, %arg6: memref<32x128xf32, #tpu.memory_space<vmem>>, %arg7: memref<1x128xf32, #tpu.memory_space<vmem>>, %arg8: memref<8x128xf32, #tpu.memory_space<vmem>>) attributes {dimension_semantics = [#tpu.dimension_semantics<arbitrary>], iteration_bounds = array<i64: 1>, scalar_prefetch = 0 : i64, scratch_operands = 0 : i64, tpu.core_type = #tpu.core_type<tc>, window_params = [{pipeline_mode = #tpu.pipeline_mode<synchronous>, transform_indices = @transform_0, window_bounds = array<i64: 8, 1>}, {pipeline_mode = #tpu.pipeline_mode<synchronous>, transform_indices = @transform_1, window_bounds = array<i64: 8, 8, 128>}, {pipeline_mode = #tpu.pipeline_mode<synchronous>, transform_indices = @transform_2, window_bounds = array<i64: 2, 32, 128>}, {pipeline_mode = #tpu.pipeline_mode<synchronous>, transform_indices = @transform_3, window_bounds = array<i64: 1, 32, 128>}, {pipeline_mode = #tpu.pipeline_mode<synchronous>, transform_indices = @transform_4, window_bounds = array<i64: 1, 1, 128>}, {pipeline_mode = #tpu.pipeline_mode<synchronous>, transform_indices = @transform_5, window_bounds = array<i64: 32, 128>}, {pipeline_mode = #tpu.pipeline_mode<synchronous>, transform_indices = @transform_6, window_bounds = array<i64: 1, 128>}, {pipeline_mode = #tpu.pipeline_mode<synchronous>, transform_indices = @transform_7, window_bounds = array<i64: 8, 128>}]} {
    %c0 = arith.constant 0 : index
    %c0_0 = arith.constant 0 : index
    %0 = vector.load %arg1[%c0, %c0_0] : memref<8x1xi32, #tpu.memory_space<vmem>>, vector<8x1xi32>
    %1 = tpu.iota {dimensions = array<i32: 1>} : vector<8x128xi32>
    %c64_i32 = arith.constant 64 : i32
    %2 = vector.broadcast %c64_i32 : i32 to vector<8x128xi32>
    %3 = arith.cmpi sge, %1, %2 : vector<8x128xi32>
    %c96_i32 = arith.constant 96 : i32
    %4 = vector.broadcast %c96_i32 : i32 to vector<8x128xi32>
    %5 = arith.cmpi slt, %1, %4 : vector<8x128xi32>
    %6 = arith.andi %3, %5 : vector<8x128xi1>
    %c0_1 = arith.constant 0 : index
    %c0_2 = arith.constant 0 : index
    %c0_3 = arith.constant 0 : index
    %7 = vector.load %arg3[%c0_1, %c0_2, %c0_3] : memref<2x32x128xf32, #tpu.memory_space<vmem>>, vector<1x32x128xf32>
    %8 = vector.shape_cast %7 : vector<1x32x128xf32> to vector<32x128xf32>
    %c1 = arith.constant 1 : index
    %c0_4 = arith.constant 0 : index
    %c0_5 = arith.constant 0 : index
    %9 = vector.load %arg3[%c1, %c0_4, %c0_5] : memref<2x32x128xf32, #tpu.memory_space<vmem>>, vector<1x32x128xf32>
    %10 = vector.shape_cast %9 : vector<1x32x128xf32> to vector<32x128xf32>
    %c0_6 = arith.constant 0 : index
    %c0_7 = arith.constant 0 : index
    %c0_8 = arith.constant 0 : index
    %11 = vector.load %arg4[%c0_6, %c0_7, %c0_8] : memref<1x32x128xf32, #tpu.memory_space<vmem>>, vector<1x32x128xf32>
    %12 = vector.shape_cast %11 : vector<1x32x128xf32> to vector<32x128xf32>
    %c0_9 = arith.constant 0 : index
    %c0_10 = arith.constant 0 : index
    %c0_11 = arith.constant 0 : index
    %13 = vector.load %arg5[%c0_9, %c0_10, %c0_11] : memref<1x1x128xf32, #tpu.memory_space<vmem>>, vector<1x1x128xf32>
    %14 = vector.shape_cast %13 : vector<1x1x128xf32> to vector<1x128xf32>
    %15 = vector.shape_cast %14 : vector<1x128xf32> to vector<1x128xf32>
    %16 = vector.broadcast %15 : vector<1x128xf32> to vector<8x128xf32>
    %cst = arith.constant 0.000000e+00 : f32
    %17 = vector.broadcast %cst : f32 to vector<8x32xf32>
    %cst_12 = arith.constant 0.000000e+00 : f32
    %18 = vector.broadcast %cst_12 : f32 to vector<8x32xf32>
    %c0_i32 = arith.constant 0 : i32
    %19 = vector.broadcast %c0_i32 : i32 to vector<8x1xi32>
    %20 = arith.cmpi slt, %19, %0 : vector<8x1xi32>
    %21 = vector.shape_cast %20 : vector<8x1xi1> to vector<8x1xi1>
    %22 = vector.broadcast %21 : vector<8x1xi1> to vector<8x32xi1>
    %23 = arith.index_cast %c0_i32 : i32 to index
    %c0_13 = arith.constant 0 : index
    %c0_14 = arith.constant 0 : index
    %24 = vector.load %arg2[%23, %c0_13, %c0_14] : memref<8x8x128xf32, #tpu.memory_space<vmem>>, vector<1x8x128xf32>
    %25 = vector.shape_cast %24 : vector<1x8x128xf32> to vector<8x128xf32>
    %cst_15 = arith.constant dense<0.000000e+00> : vector<8x128xf32>
    %26 = tpu.matmul %17, %8, %cst_15 {dimension_numbers = #tpu.dot_dimension_numbers<[1], [0], [0], [1], [0, 0, 1, 1], [], []>} : vector<8x32xf32>, vector<32x128xf32>, vector<8x128xf32> -> vector<8x128xf32>
    %27 = arith.addf %25, %26 : vector<8x128xf32>
    %28 = math.tanh %27 : vector<8x128xf32>
    %cst_16 = arith.constant 5.000000e-01 : f32
    %29 = vector.broadcast %cst_16 : f32 to vector<8x128xf32>
    %30 = arith.mulf %29, %28 : vector<8x128xf32>
    %cst_17 = arith.constant 5.000000e-01 : f32
    %31 = vector.broadcast %cst_17 : f32 to vector<8x128xf32>
    %32 = arith.addf %30, %31 : vector<8x128xf32>
    %33 = arith.select %6, %28, %32 : vector<8x128xi1>, vector<8x128xf32>
    %34 = vector.extract_strided_slice %33 {offsets = [0, 0], sizes = [8, 32], strides = [1, 1]} : vector<8x128xf32> to vector<8x32xf32>
    %35 = vector.extract_strided_slice %33 {offsets = [0, 32], sizes = [8, 32], strides = [1, 1]} : vector<8x128xf32> to vector<8x32xf32>
    %36 = vector.extract_strided_slice %33 {offsets = [0, 64], sizes = [8, 32], strides = [1, 1]} : vector<8x128xf32> to vector<8x32xf32>
    %37 = vector.extract_strided_slice %33 {offsets = [0, 96], sizes = [8, 32], strides = [1, 1]} : vector<8x128xf32> to vector<8x32xf32>
    %38 = arith.mulf %35, %17 : vector<8x32xf32>
    %39 = arith.mulf %34, %36 : vector<8x32xf32>
    %40 = arith.addf %38, %39 : vector<8x32xf32>
    %41 = math.tanh %40 : vector<8x32xf32>
    %42 = arith.mulf %37, %41 : vector<8x32xf32>
    %43 = arith.select %22, %42, %17 : vector<8x32xi1>, vector<8x32xf32>
    %44 = arith.select %22, %40, %17 : vector<8x32xi1>, vector<8x32xf32>
    %cst_18 = arith.constant dense<0.000000e+00> : vector<8x128xf32>
    %45 = tpu.matmul %43, %12, %cst_18 {dimension_numbers = #tpu.dot_dimension_numbers<[1], [0], [0], [1], [0, 0, 1, 1], [], []>} : vector<8x32xf32>, vector<32x128xf32>, vector<8x128xf32> -> vector<8x128xf32>
    %cst_19 = arith.constant dense<0.000000e+00> : vector<8x128xf32>
    %46 = tpu.matmul %18, %10, %cst_19 {dimension_numbers = #tpu.dot_dimension_numbers<[1], [0], [0], [1], [0, 0, 1, 1], [], []>} : vector<8x32xf32>, vector<32x128xf32>, vector<8x128xf32> -> vector<8x128xf32>
    %47 = arith.addf %45, %46 : vector<8x128xf32>
    %48 = arith.addf %47, %16 : vector<8x128xf32>
    %49 = math.tanh %48 : vector<8x128xf32>
    %cst_20 = arith.constant 5.000000e-01 : f32
    %50 = vector.broadcast %cst_20 : f32 to vector<8x128xf32>
    %51 = arith.mulf %50, %49 : vector<8x128xf32>
    %cst_21 = arith.constant 5.000000e-01 : f32
    %52 = vector.broadcast %cst_21 : f32 to vector<8x128xf32>
    %53 = arith.addf %51, %52 : vector<8x128xf32>
    %54 = arith.select %6, %49, %53 : vector<8x128xi1>, vector<8x128xf32>
    %55 = vector.extract_strided_slice %54 {offsets = [0, 0], sizes = [8, 32], strides = [1, 1]} : vector<8x128xf32> to vector<8x32xf32>
    %56 = vector.extract_strided_slice %54 {offsets = [0, 32], sizes = [8, 32], strides = [1, 1]} : vector<8x128xf32> to vector<8x32xf32>
    %57 = vector.extract_strided_slice %54 {offsets = [0, 64], sizes = [8, 32], strides = [1, 1]} : vector<8x128xf32> to vector<8x32xf32>
    %58 = vector.extract_strided_slice %54 {offsets = [0, 96], sizes = [8, 32], strides = [1, 1]} : vector<8x128xf32> to vector<8x32xf32>
    %59 = arith.mulf %56, %18 : vector<8x32xf32>
    %60 = arith.mulf %55, %57 : vector<8x32xf32>
    %61 = arith.addf %59, %60 : vector<8x32xf32>
    %62 = math.tanh %61 : vector<8x32xf32>
    %63 = arith.mulf %58, %62 : vector<8x32xf32>
    %64 = arith.select %22, %63, %18 : vector<8x32xi1>, vector<8x32xf32>
    %65 = arith.select %22, %61, %18 : vector<8x32xi1>, vector<8x32xf32>
    %c1_i32 = arith.constant 1 : i32
    %66 = vector.broadcast %c1_i32 : i32 to vector<8x1xi32>
    %67 = arith.cmpi slt, %66, %0 : vector<8x1xi32>
    %68 = vector.shape_cast %67 : vector<8x1xi1> to vector<8x1xi1>
    %69 = vector.broadcast %68 : vector<8x1xi1> to vector<8x32xi1>
    %70 = arith.index_cast %c1_i32 : i32 to index
    %c0_22 = arith.constant 0 : index
    %c0_23 = arith.constant 0 : index
    %71 = vector.load %arg2[%70, %c0_22, %c0_23] : memref<8x8x128xf32, #tpu.memory_space<vmem>>, vector<1x8x128xf32>
    %72 = vector.shape_cast %71 : vector<1x8x128xf32> to vector<8x128xf32>
    %cst_24 = arith.constant dense<0.000000e+00> : vector<8x128xf32>
    %73 = tpu.matmul %43, %8, %cst_24 {dimension_numbers = #tpu.dot_dimension_numbers<[1], [0], [0], [1], [0, 0, 1, 1], [], []>} : vector<8x32xf32>, vector<32x128xf32>, vector<8x128xf32> -> vector<8x128xf32>
    %74 = arith.addf %72, %73 : vector<8x128xf32>
    %75 = math.tanh %74 : vector<8x128xf32>
    %cst_25 = arith.constant 5.000000e-01 : f32
    %76 = vector.broadcast %cst_25 : f32 to vector<8x128xf32>
    %77 = arith.mulf %76, %75 : vector<8x128xf32>
    %cst_26 = arith.constant 5.000000e-01 : f32
    %78 = vector.broadcast %cst_26 : f32 to vector<8x128xf32>
    %79 = arith.addf %77, %78 : vector<8x128xf32>
    %80 = arith.select %6, %75, %79 : vector<8x128xi1>, vector<8x128xf32>
    %81 = vector.extract_strided_slice %80 {offsets = [0, 0], sizes = [8, 32], strides = [1, 1]} : vector<8x128xf32> to vector<8x32xf32>
    %82 = vector.extract_strided_slice %80 {offsets = [0, 32], sizes = [8, 32], strides = [1, 1]} : vector<8x128xf32> to vector<8x32xf32>
    %83 = vector.extract_strided_slice %80 {offsets = [0, 64], sizes = [8, 32], strides = [1, 1]} : vector<8x128xf32> to vector<8x32xf32>
    %84 = vector.extract_strided_slice %80 {offsets = [0, 96], sizes = [8, 32], strides = [1, 1]} : vector<8x128xf32> to vector<8x32xf32>
    %85 = arith.mulf %82, %44 : vector<8x32xf32>
    %86 = arith.mulf %81, %83 : vector<8x32xf32>
    %87 = arith.addf %85, %86 : vector<8x32xf32>
    %88 = math.tanh %87 : vector<8x32xf32>
    %89 = arith.mulf %84, %88 : vector<8x32xf32>
    %90 = arith.select %69, %89, %43 : vector<8x32xi1>, vector<8x32xf32>
    %91 = arith.select %69, %87, %44 : vector<8x32xi1>, vector<8x32xf32>
    %cst_27 = arith.constant dense<0.000000e+00> : vector<8x128xf32>
    %92 = tpu.matmul %90, %12, %cst_27 {dimension_numbers = #tpu.dot_dimension_numbers<[1], [0], [0], [1], [0, 0, 1, 1], [], []>} : vector<8x32xf32>, vector<32x128xf32>, vector<8x128xf32> -> vector<8x128xf32>
    %cst_28 = arith.constant dense<0.000000e+00> : vector<8x128xf32>
    %93 = tpu.matmul %64, %10, %cst_28 {dimension_numbers = #tpu.dot_dimension_numbers<[1], [0], [0], [1], [0, 0, 1, 1], [], []>} : vector<8x32xf32>, vector<32x128xf32>, vector<8x128xf32> -> vector<8x128xf32>
    %94 = arith.addf %92, %93 : vector<8x128xf32>
    %95 = arith.addf %94, %16 : vector<8x128xf32>
    %96 = math.tanh %95 : vector<8x128xf32>
    %cst_29 = arith.constant 5.000000e-01 : f32
    %97 = vector.broadcast %cst_29 : f32 to vector<8x128xf32>
    %98 = arith.mulf %97, %96 : vector<8x128xf32>
    %cst_30 = arith.constant 5.000000e-01 : f32
    %99 = vector.broadcast %cst_30 : f32 to vector<8x128xf32>
    %100 = arith.addf %98, %99 : vector<8x128xf32>
    %101 = arith.select %6, %96, %100 : vector<8x128xi1>, vector<8x128xf32>
    %102 = vector.extract_strided_slice %101 {offsets = [0, 0], sizes = [8, 32], strides = [1, 1]} : vector<8x128xf32> to vector<8x32xf32>
    %103 = vector.extract_strided_slice %101 {offsets = [0, 32], sizes = [8, 32], strides = [1, 1]} : vector<8x128xf32> to vector<8x32xf32>
    %104 = vector.extract_strided_slice %101 {offsets = [0, 64], sizes = [8, 32], strides = [1, 1]} : vector<8x128xf32> to vector<8x32xf32>
    %105 = vector.extract_strided_slice %101 {offsets = [0, 96], sizes = [8, 32], strides = [1, 1]} : vector<8x128xf32> to vector<8x32xf32>
    %106 = arith.mulf %103, %65 : vector<8x32xf32>
    %107 = arith.mulf %102, %104 : vector<8x32xf32>
    %108 = arith.addf %106, %107 : vector<8x32xf32>
    %109 = math.tanh %108 : vector<8x32xf32>
    %110 = arith.mulf %105, %109 : vector<8x32xf32>
    %111 = arith.select %69, %110, %64 : vector<8x32xi1>, vector<8x32xf32>
    %112 = arith.select %69, %108, %65 : vector<8x32xi1>, vector<8x32xf32>
    %c2_i32 = arith.constant 2 : i32
    %113 = vector.broadcast %c2_i32 : i32 to vector<8x1xi32>
    %114 = arith.cmpi slt, %113, %0 : vector<8x1xi32>
    %115 = vector.shape_cast %114 : vector<8x1xi1> to vector<8x1xi1>
    %116 = vector.broadcast %115 : vector<8x1xi1> to vector<8x32xi1>
    %117 = arith.index_cast %c2_i32 : i32 to index
    %c0_31 = arith.constant 0 : index
    %c0_32 = arith.constant 0 : index
    %118 = vector.load %arg2[%117, %c0_31, %c0_32] : memref<8x8x128xf32, #tpu.memory_space<vmem>>, vector<1x8x128xf32>
    %119 = vector.shape_cast %118 : vector<1x8x128xf32> to vector<8x128xf32>
    %cst_33 = arith.constant dense<0.000000e+00> : vector<8x128xf32>
    %120 = tpu.matmul %90, %8, %cst_33 {dimension_numbers = #tpu.dot_dimension_numbers<[1], [0], [0], [1], [0, 0, 1, 1], [], []>} : vector<8x32xf32>, vector<32x128xf32>, vector<8x128xf32> -> vector<8x128xf32>
    %121 = arith.addf %119, %120 : vector<8x128xf32>
    %122 = math.tanh %121 : vector<8x128xf32>
    %cst_34 = arith.constant 5.000000e-01 : f32
    %123 = vector.broadcast %cst_34 : f32 to vector<8x128xf32>
    %124 = arith.mulf %123, %122 : vector<8x128xf32>
    %cst_35 = arith.constant 5.000000e-01 : f32
    %125 = vector.broadcast %cst_35 : f32 to vector<8x128xf32>
    %126 = arith.addf %124, %125 : vector<8x128xf32>
    %127 = arith.select %6, %122, %126 : vector<8x128xi1>, vector<8x128xf32>
    %128 = vector.extract_strided_slice %127 {offsets = [0, 0], sizes = [8, 32], strides = [1, 1]} : vector<8x128xf32> to vector<8x32xf32>
    %129 = vector.extract_strided_slice %127 {offsets = [0, 32], sizes = [8, 32], strides = [1, 1]} : vector<8x128xf32> to vector<8x32xf32>
    %130 = vector.extract_strided_slice %127 {offsets = [0, 64], sizes = [8, 32], strides = [1, 1]} : vector<8x128xf32> to vector<8x32xf32>
    %131 = vector.extract_strided_slice %127 {offsets = [0, 96], sizes = [8, 32], strides = [1, 1]} : vector<8x128xf32> to vector<8x32xf32>
    %132 = arith.mulf %129, %91 : vector<8x32xf32>
    %133 = arith.mulf %128, %130 : vector<8x32xf32>
    %134 = arith.addf %132, %133 : vector<8x32xf32>
    %135 = math.tanh %134 : vector<8x32xf32>
    %136 = arith.mulf %131, %135 : vector<8x32xf32>
    %137 = arith.select %116, %136, %90 : vector<8x32xi1>, vector<8x32xf32>
    %138 = arith.select %116, %134, %91 : vector<8x32xi1>, vector<8x32xf32>
    %cst_36 = arith.constant dense<0.000000e+00> : vector<8x128xf32>
    %139 = tpu.matmul %137, %12, %cst_36 {dimension_numbers = #tpu.dot_dimension_numbers<[1], [0], [0], [1], [0, 0, 1, 1], [], []>} : vector<8x32xf32>, vector<32x128xf32>, vector<8x128xf32> -> vector<8x128xf32>
    %cst_37 = arith.constant dense<0.000000e+00> : vector<8x128xf32>
    %140 = tpu.matmul %111, %10, %cst_37 {dimension_numbers = #tpu.dot_dimension_numbers<[1], [0], [0], [1], [0, 0, 1, 1], [], []>} : vector<8x32xf32>, vector<32x128xf32>, vector<8x128xf32> -> vector<8x128xf32>
    %141 = arith.addf %139, %140 : vector<8x128xf32>
    %142 = arith.addf %141, %16 : vector<8x128xf32>
    %143 = math.tanh %142 : vector<8x128xf32>
    %cst_38 = arith.constant 5.000000e-01 : f32
    %144 = vector.broadcast %cst_38 : f32 to vector<8x128xf32>
    %145 = arith.mulf %144, %143 : vector<8x128xf32>
    %cst_39 = arith.constant 5.000000e-01 : f32
    %146 = vector.broadcast %cst_39 : f32 to vector<8x128xf32>
    %147 = arith.addf %145, %146 : vector<8x128xf32>
    %148 = arith.select %6, %143, %147 : vector<8x128xi1>, vector<8x128xf32>
    %149 = vector.extract_strided_slice %148 {offsets = [0, 0], sizes = [8, 32], strides = [1, 1]} : vector<8x128xf32> to vector<8x32xf32>
    %150 = vector.extract_strided_slice %148 {offsets = [0, 32], sizes = [8, 32], strides = [1, 1]} : vector<8x128xf32> to vector<8x32xf32>
    %151 = vector.extract_strided_slice %148 {offsets = [0, 64], sizes = [8, 32], strides = [1, 1]} : vector<8x128xf32> to vector<8x32xf32>
    %152 = vector.extract_strided_slice %148 {offsets = [0, 96], sizes = [8, 32], strides = [1, 1]} : vector<8x128xf32> to vector<8x32xf32>
    %153 = arith.mulf %150, %112 : vector<8x32xf32>
    %154 = arith.mulf %149, %151 : vector<8x32xf32>
    %155 = arith.addf %153, %154 : vector<8x32xf32>
    %156 = math.tanh %155 : vector<8x32xf32>
    %157 = arith.mulf %152, %156 : vector<8x32xf32>
    %158 = arith.select %116, %157, %111 : vector<8x32xi1>, vector<8x32xf32>
    %159 = arith.select %116, %155, %112 : vector<8x32xi1>, vector<8x32xf32>
    %c3_i32 = arith.constant 3 : i32
    %160 = vector.broadcast %c3_i32 : i32 to vector<8x1xi32>
    %161 = arith.cmpi slt, %160, %0 : vector<8x1xi32>
    %162 = vector.shape_cast %161 : vector<8x1xi1> to vector<8x1xi1>
    %163 = vector.broadcast %162 : vector<8x1xi1> to vector<8x32xi1>
    %164 = arith.index_cast %c3_i32 : i32 to index
    %c0_40 = arith.constant 0 : index
    %c0_41 = arith.constant 0 : index
    %165 = vector.load %arg2[%164, %c0_40, %c0_41] : memref<8x8x128xf32, #tpu.memory_space<vmem>>, vector<1x8x128xf32>
    %166 = vector.shape_cast %165 : vector<1x8x128xf32> to vector<8x128xf32>
    %cst_42 = arith.constant dense<0.000000e+00> : vector<8x128xf32>
    %167 = tpu.matmul %137, %8, %cst_42 {dimension_numbers = #tpu.dot_dimension_numbers<[1], [0], [0], [1], [0, 0, 1, 1], [], []>} : vector<8x32xf32>, vector<32x128xf32>, vector<8x128xf32> -> vector<8x128xf32>
    %168 = arith.addf %166, %167 : vector<8x128xf32>
    %169 = math.tanh %168 : vector<8x128xf32>
    %cst_43 = arith.constant 5.000000e-01 : f32
    %170 = vector.broadcast %cst_43 : f32 to vector<8x128xf32>
    %171 = arith.mulf %170, %169 : vector<8x128xf32>
    %cst_44 = arith.constant 5.000000e-01 : f32
    %172 = vector.broadcast %cst_44 : f32 to vector<8x128xf32>
    %173 = arith.addf %171, %172 : vector<8x128xf32>
    %174 = arith.select %6, %169, %173 : vector<8x128xi1>, vector<8x128xf32>
    %175 = vector.extract_strided_slice %174 {offsets = [0, 0], sizes = [8, 32], strides = [1, 1]} : vector<8x128xf32> to vector<8x32xf32>
    %176 = vector.extract_strided_slice %174 {offsets = [0, 32], sizes = [8, 32], strides = [1, 1]} : vector<8x128xf32> to vector<8x32xf32>
    %177 = vector.extract_strided_slice %174 {offsets = [0, 64], sizes = [8, 32], strides = [1, 1]} : vector<8x128xf32> to vector<8x32xf32>
    %178 = vector.extract_strided_slice %174 {offsets = [0, 96], sizes = [8, 32], strides = [1, 1]} : vector<8x128xf32> to vector<8x32xf32>
    %179 = arith.mulf %176, %138 : vector<8x32xf32>
    %180 = arith.mulf %175, %177 : vector<8x32xf32>
    %181 = arith.addf %179, %180 : vector<8x32xf32>
    %182 = math.tanh %181 : vector<8x32xf32>
    %183 = arith.mulf %178, %182 : vector<8x32xf32>
    %184 = arith.select %163, %183, %137 : vector<8x32xi1>, vector<8x32xf32>
    %185 = arith.select %163, %181, %138 : vector<8x32xi1>, vector<8x32xf32>
    %cst_45 = arith.constant dense<0.000000e+00> : vector<8x128xf32>
    %186 = tpu.matmul %184, %12, %cst_45 {dimension_numbers = #tpu.dot_dimension_numbers<[1], [0], [0], [1], [0, 0, 1, 1], [], []>} : vector<8x32xf32>, vector<32x128xf32>, vector<8x128xf32> -> vector<8x128xf32>
    %cst_46 = arith.constant dense<0.000000e+00> : vector<8x128xf32>
    %187 = tpu.matmul %158, %10, %cst_46 {dimension_numbers = #tpu.dot_dimension_numbers<[1], [0], [0], [1], [0, 0, 1, 1], [], []>} : vector<8x32xf32>, vector<32x128xf32>, vector<8x128xf32> -> vector<8x128xf32>
    %188 = arith.addf %186, %187 : vector<8x128xf32>
    %189 = arith.addf %188, %16 : vector<8x128xf32>
    %190 = math.tanh %189 : vector<8x128xf32>
    %cst_47 = arith.constant 5.000000e-01 : f32
    %191 = vector.broadcast %cst_47 : f32 to vector<8x128xf32>
    %192 = arith.mulf %191, %190 : vector<8x128xf32>
    %cst_48 = arith.constant 5.000000e-01 : f32
    %193 = vector.broadcast %cst_48 : f32 to vector<8x128xf32>
    %194 = arith.addf %192, %193 : vector<8x128xf32>
    %195 = arith.select %6, %190, %194 : vector<8x128xi1>, vector<8x128xf32>
    %196 = vector.extract_strided_slice %195 {offsets = [0, 0], sizes = [8, 32], strides = [1, 1]} : vector<8x128xf32> to vector<8x32xf32>
    %197 = vector.extract_strided_slice %195 {offsets = [0, 32], sizes = [8, 32], strides = [1, 1]} : vector<8x128xf32> to vector<8x32xf32>
    %198 = vector.extract_strided_slice %195 {offsets = [0, 64], sizes = [8, 32], strides = [1, 1]} : vector<8x128xf32> to vector<8x32xf32>
    %199 = vector.extract_strided_slice %195 {offsets = [0, 96], sizes = [8, 32], strides = [1, 1]} : vector<8x128xf32> to vector<8x32xf32>
    %200 = arith.mulf %197, %159 : vector<8x32xf32>
    %201 = arith.mulf %196, %198 : vector<8x32xf32>
    %202 = arith.addf %200, %201 : vector<8x32xf32>
    %203 = math.tanh %202 : vector<8x32xf32>
    %204 = arith.mulf %199, %203 : vector<8x32xf32>
    %205 = arith.select %163, %204, %158 : vector<8x32xi1>, vector<8x32xf32>
    %206 = arith.select %163, %202, %159 : vector<8x32xi1>, vector<8x32xf32>
    %c4_i32 = arith.constant 4 : i32
    %207 = vector.broadcast %c4_i32 : i32 to vector<8x1xi32>
    %208 = arith.cmpi slt, %207, %0 : vector<8x1xi32>
    %209 = vector.shape_cast %208 : vector<8x1xi1> to vector<8x1xi1>
    %210 = vector.broadcast %209 : vector<8x1xi1> to vector<8x32xi1>
    %211 = arith.index_cast %c4_i32 : i32 to index
    %c0_49 = arith.constant 0 : index
    %c0_50 = arith.constant 0 : index
    %212 = vector.load %arg2[%211, %c0_49, %c0_50] : memref<8x8x128xf32, #tpu.memory_space<vmem>>, vector<1x8x128xf32>
    %213 = vector.shape_cast %212 : vector<1x8x128xf32> to vector<8x128xf32>
    %cst_51 = arith.constant dense<0.000000e+00> : vector<8x128xf32>
    %214 = tpu.matmul %184, %8, %cst_51 {dimension_numbers = #tpu.dot_dimension_numbers<[1], [0], [0], [1], [0, 0, 1, 1], [], []>} : vector<8x32xf32>, vector<32x128xf32>, vector<8x128xf32> -> vector<8x128xf32>
    %215 = arith.addf %213, %214 : vector<8x128xf32>
    %216 = math.tanh %215 : vector<8x128xf32>
    %cst_52 = arith.constant 5.000000e-01 : f32
    %217 = vector.broadcast %cst_52 : f32 to vector<8x128xf32>
    %218 = arith.mulf %217, %216 : vector<8x128xf32>
    %cst_53 = arith.constant 5.000000e-01 : f32
    %219 = vector.broadcast %cst_53 : f32 to vector<8x128xf32>
    %220 = arith.addf %218, %219 : vector<8x128xf32>
    %221 = arith.select %6, %216, %220 : vector<8x128xi1>, vector<8x128xf32>
    %222 = vector.extract_strided_slice %221 {offsets = [0, 0], sizes = [8, 32], strides = [1, 1]} : vector<8x128xf32> to vector<8x32xf32>
    %223 = vector.extract_strided_slice %221 {offsets = [0, 32], sizes = [8, 32], strides = [1, 1]} : vector<8x128xf32> to vector<8x32xf32>
    %224 = vector.extract_strided_slice %221 {offsets = [0, 64], sizes = [8, 32], strides = [1, 1]} : vector<8x128xf32> to vector<8x32xf32>
    %225 = vector.extract_strided_slice %221 {offsets = [0, 96], sizes = [8, 32], strides = [1, 1]} : vector<8x128xf32> to vector<8x32xf32>
    %226 = arith.mulf %223, %185 : vector<8x32xf32>
    %227 = arith.mulf %222, %224 : vector<8x32xf32>
    %228 = arith.addf %226, %227 : vector<8x32xf32>
    %229 = math.tanh %228 : vector<8x32xf32>
    %230 = arith.mulf %225, %229 : vector<8x32xf32>
    %231 = arith.select %210, %230, %184 : vector<8x32xi1>, vector<8x32xf32>
    %232 = arith.select %210, %228, %185 : vector<8x32xi1>, vector<8x32xf32>
    %cst_54 = arith.constant dense<0.000000e+00> : vector<8x128xf32>
    %233 = tpu.matmul %231, %12, %cst_54 {dimension_numbers = #tpu.dot_dimension_numbers<[1], [0], [0], [1], [0, 0, 1, 1], [], []>} : vector<8x32xf32>, vector<32x128xf32>, vector<8x128xf32> -> vector<8x128xf32>
    %cst_55 = arith.constant dense<0.000000e+00> : vector<8x128xf32>
    %234 = tpu.matmul %205, %10, %cst_55 {dimension_numbers = #tpu.dot_dimension_numbers<[1], [0], [0], [1], [0, 0, 1, 1], [], []>} : vector<8x32xf32>, vector<32x128xf32>, vector<8x128xf32> -> vector<8x128xf32>
    %235 = arith.addf %233, %234 : vector<8x128xf32>
    %236 = arith.addf %235, %16 : vector<8x128xf32>
    %237 = math.tanh %236 : vector<8x128xf32>
    %cst_56 = arith.constant 5.000000e-01 : f32
    %238 = vector.broadcast %cst_56 : f32 to vector<8x128xf32>
    %239 = arith.mulf %238, %237 : vector<8x128xf32>
    %cst_57 = arith.constant 5.000000e-01 : f32
    %240 = vector.broadcast %cst_57 : f32 to vector<8x128xf32>
    %241 = arith.addf %239, %240 : vector<8x128xf32>
    %242 = arith.select %6, %237, %241 : vector<8x128xi1>, vector<8x128xf32>
    %243 = vector.extract_strided_slice %242 {offsets = [0, 0], sizes = [8, 32], strides = [1, 1]} : vector<8x128xf32> to vector<8x32xf32>
    %244 = vector.extract_strided_slice %242 {offsets = [0, 32], sizes = [8, 32], strides = [1, 1]} : vector<8x128xf32> to vector<8x32xf32>
    %245 = vector.extract_strided_slice %242 {offsets = [0, 64], sizes = [8, 32], strides = [1, 1]} : vector<8x128xf32> to vector<8x32xf32>
    %246 = vector.extract_strided_slice %242 {offsets = [0, 96], sizes = [8, 32], strides = [1, 1]} : vector<8x128xf32> to vector<8x32xf32>
    %247 = arith.mulf %244, %206 : vector<8x32xf32>
    %248 = arith.mulf %243, %245 : vector<8x32xf32>
    %249 = arith.addf %247, %248 : vector<8x32xf32>
    %250 = math.tanh %249 : vector<8x32xf32>
    %251 = arith.mulf %246, %250 : vector<8x32xf32>
    %252 = arith.select %210, %251, %205 : vector<8x32xi1>, vector<8x32xf32>
    %253 = arith.select %210, %249, %206 : vector<8x32xi1>, vector<8x32xf32>
    %c5_i32 = arith.constant 5 : i32
    %254 = vector.broadcast %c5_i32 : i32 to vector<8x1xi32>
    %255 = arith.cmpi slt, %254, %0 : vector<8x1xi32>
    %256 = vector.shape_cast %255 : vector<8x1xi1> to vector<8x1xi1>
    %257 = vector.broadcast %256 : vector<8x1xi1> to vector<8x32xi1>
    %258 = arith.index_cast %c5_i32 : i32 to index
    %c0_58 = arith.constant 0 : index
    %c0_59 = arith.constant 0 : index
    %259 = vector.load %arg2[%258, %c0_58, %c0_59] : memref<8x8x128xf32, #tpu.memory_space<vmem>>, vector<1x8x128xf32>
    %260 = vector.shape_cast %259 : vector<1x8x128xf32> to vector<8x128xf32>
    %cst_60 = arith.constant dense<0.000000e+00> : vector<8x128xf32>
    %261 = tpu.matmul %231, %8, %cst_60 {dimension_numbers = #tpu.dot_dimension_numbers<[1], [0], [0], [1], [0, 0, 1, 1], [], []>} : vector<8x32xf32>, vector<32x128xf32>, vector<8x128xf32> -> vector<8x128xf32>
    %262 = arith.addf %260, %261 : vector<8x128xf32>
    %263 = math.tanh %262 : vector<8x128xf32>
    %cst_61 = arith.constant 5.000000e-01 : f32
    %264 = vector.broadcast %cst_61 : f32 to vector<8x128xf32>
    %265 = arith.mulf %264, %263 : vector<8x128xf32>
    %cst_62 = arith.constant 5.000000e-01 : f32
    %266 = vector.broadcast %cst_62 : f32 to vector<8x128xf32>
    %267 = arith.addf %265, %266 : vector<8x128xf32>
    %268 = arith.select %6, %263, %267 : vector<8x128xi1>, vector<8x128xf32>
    %269 = vector.extract_strided_slice %268 {offsets = [0, 0], sizes = [8, 32], strides = [1, 1]} : vector<8x128xf32> to vector<8x32xf32>
    %270 = vector.extract_strided_slice %268 {offsets = [0, 32], sizes = [8, 32], strides = [1, 1]} : vector<8x128xf32> to vector<8x32xf32>
    %271 = vector.extract_strided_slice %268 {offsets = [0, 64], sizes = [8, 32], strides = [1, 1]} : vector<8x128xf32> to vector<8x32xf32>
    %272 = vector.extract_strided_slice %268 {offsets = [0, 96], sizes = [8, 32], strides = [1, 1]} : vector<8x128xf32> to vector<8x32xf32>
    %273 = arith.mulf %270, %232 : vector<8x32xf32>
    %274 = arith.mulf %269, %271 : vector<8x32xf32>
    %275 = arith.addf %273, %274 : vector<8x32xf32>
    %276 = math.tanh %275 : vector<8x32xf32>
    %277 = arith.mulf %272, %276 : vector<8x32xf32>
    %278 = arith.select %257, %277, %231 : vector<8x32xi1>, vector<8x32xf32>
    %279 = arith.select %257, %275, %232 : vector<8x32xi1>, vector<8x32xf32>
    %cst_63 = arith.constant dense<0.000000e+00> : vector<8x128xf32>
    %280 = tpu.matmul %278, %12, %cst_63 {dimension_numbers = #tpu.dot_dimension_numbers<[1], [0], [0], [1], [0, 0, 1, 1], [], []>} : vector<8x32xf32>, vector<32x128xf32>, vector<8x128xf32> -> vector<8x128xf32>
    %cst_64 = arith.constant dense<0.000000e+00> : vector<8x128xf32>
    %281 = tpu.matmul %252, %10, %cst_64 {dimension_numbers = #tpu.dot_dimension_numbers<[1], [0], [0], [1], [0, 0, 1, 1], [], []>} : vector<8x32xf32>, vector<32x128xf32>, vector<8x128xf32> -> vector<8x128xf32>
    %282 = arith.addf %280, %281 : vector<8x128xf32>
    %283 = arith.addf %282, %16 : vector<8x128xf32>
    %284 = math.tanh %283 : vector<8x128xf32>
    %cst_65 = arith.constant 5.000000e-01 : f32
    %285 = vector.broadcast %cst_65 : f32 to vector<8x128xf32>
    %286 = arith.mulf %285, %284 : vector<8x128xf32>
    %cst_66 = arith.constant 5.000000e-01 : f32
    %287 = vector.broadcast %cst_66 : f32 to vector<8x128xf32>
    %288 = arith.addf %286, %287 : vector<8x128xf32>
    %289 = arith.select %6, %284, %288 : vector<8x128xi1>, vector<8x128xf32>
    %290 = vector.extract_strided_slice %289 {offsets = [0, 0], sizes = [8, 32], strides = [1, 1]} : vector<8x128xf32> to vector<8x32xf32>
    %291 = vector.extract_strided_slice %289 {offsets = [0, 32], sizes = [8, 32], strides = [1, 1]} : vector<8x128xf32> to vector<8x32xf32>
    %292 = vector.extract_strided_slice %289 {offsets = [0, 64], sizes = [8, 32], strides = [1, 1]} : vector<8x128xf32> to vector<8x32xf32>
    %293 = vector.extract_strided_slice %289 {offsets = [0, 96], sizes = [8, 32], strides = [1, 1]} : vector<8x128xf32> to vector<8x32xf32>
    %294 = arith.mulf %291, %253 : vector<8x32xf32>
    %295 = arith.mulf %290, %292 : vector<8x32xf32>
    %296 = arith.addf %294, %295 : vector<8x32xf32>
    %297 = math.tanh %296 : vector<8x32xf32>
    %298 = arith.mulf %293, %297 : vector<8x32xf32>
    %299 = arith.select %257, %298, %252 : vector<8x32xi1>, vector<8x32xf32>
    %300 = arith.select %257, %296, %253 : vector<8x32xi1>, vector<8x32xf32>
    %c6_i32 = arith.constant 6 : i32
    %301 = vector.broadcast %c6_i32 : i32 to vector<8x1xi32>
    %302 = arith.cmpi slt, %301, %0 : vector<8x1xi32>
    %303 = vector.shape_cast %302 : vector<8x1xi1> to vector<8x1xi1>
    %304 = vector.broadcast %303 : vector<8x1xi1> to vector<8x32xi1>
    %305 = arith.index_cast %c6_i32 : i32 to index
    %c0_67 = arith.constant 0 : index
    %c0_68 = arith.constant 0 : index
    %306 = vector.load %arg2[%305, %c0_67, %c0_68] : memref<8x8x128xf32, #tpu.memory_space<vmem>>, vector<1x8x128xf32>
    %307 = vector.shape_cast %306 : vector<1x8x128xf32> to vector<8x128xf32>
    %cst_69 = arith.constant dense<0.000000e+00> : vector<8x128xf32>
    %308 = tpu.matmul %278, %8, %cst_69 {dimension_numbers = #tpu.dot_dimension_numbers<[1], [0], [0], [1], [0, 0, 1, 1], [], []>} : vector<8x32xf32>, vector<32x128xf32>, vector<8x128xf32> -> vector<8x128xf32>
    %309 = arith.addf %307, %308 : vector<8x128xf32>
    %310 = math.tanh %309 : vector<8x128xf32>
    %cst_70 = arith.constant 5.000000e-01 : f32
    %311 = vector.broadcast %cst_70 : f32 to vector<8x128xf32>
    %312 = arith.mulf %311, %310 : vector<8x128xf32>
    %cst_71 = arith.constant 5.000000e-01 : f32
    %313 = vector.broadcast %cst_71 : f32 to vector<8x128xf32>
    %314 = arith.addf %312, %313 : vector<8x128xf32>
    %315 = arith.select %6, %310, %314 : vector<8x128xi1>, vector<8x128xf32>
    %316 = vector.extract_strided_slice %315 {offsets = [0, 0], sizes = [8, 32], strides = [1, 1]} : vector<8x128xf32> to vector<8x32xf32>
    %317 = vector.extract_strided_slice %315 {offsets = [0, 32], sizes = [8, 32], strides = [1, 1]} : vector<8x128xf32> to vector<8x32xf32>
    %318 = vector.extract_strided_slice %315 {offsets = [0, 64], sizes = [8, 32], strides = [1, 1]} : vector<8x128xf32> to vector<8x32xf32>
    %319 = vector.extract_strided_slice %315 {offsets = [0, 96], sizes = [8, 32], strides = [1, 1]} : vector<8x128xf32> to vector<8x32xf32>
    %320 = arith.mulf %317, %279 : vector<8x32xf32>
    %321 = arith.mulf %316, %318 : vector<8x32xf32>
    %322 = arith.addf %320, %321 : vector<8x32xf32>
    %323 = math.tanh %322 : vector<8x32xf32>
    %324 = arith.mulf %319, %323 : vector<8x32xf32>
    %325 = arith.select %304, %324, %278 : vector<8x32xi1>, vector<8x32xf32>
    %326 = arith.select %304, %322, %279 : vector<8x32xi1>, vector<8x32xf32>
    %cst_72 = arith.constant dense<0.000000e+00> : vector<8x128xf32>
    %327 = tpu.matmul %325, %12, %cst_72 {dimension_numbers = #tpu.dot_dimension_numbers<[1], [0], [0], [1], [0, 0, 1, 1], [], []>} : vector<8x32xf32>, vector<32x128xf32>, vector<8x128xf32> -> vector<8x128xf32>
    %cst_73 = arith.constant dense<0.000000e+00> : vector<8x128xf32>
    %328 = tpu.matmul %299, %10, %cst_73 {dimension_numbers = #tpu.dot_dimension_numbers<[1], [0], [0], [1], [0, 0, 1, 1], [], []>} : vector<8x32xf32>, vector<32x128xf32>, vector<8x128xf32> -> vector<8x128xf32>
    %329 = arith.addf %327, %328 : vector<8x128xf32>
    %330 = arith.addf %329, %16 : vector<8x128xf32>
    %331 = math.tanh %330 : vector<8x128xf32>
    %cst_74 = arith.constant 5.000000e-01 : f32
    %332 = vector.broadcast %cst_74 : f32 to vector<8x128xf32>
    %333 = arith.mulf %332, %331 : vector<8x128xf32>
    %cst_75 = arith.constant 5.000000e-01 : f32
    %334 = vector.broadcast %cst_75 : f32 to vector<8x128xf32>
    %335 = arith.addf %333, %334 : vector<8x128xf32>
    %336 = arith.select %6, %331, %335 : vector<8x128xi1>, vector<8x128xf32>
    %337 = vector.extract_strided_slice %336 {offsets = [0, 0], sizes = [8, 32], strides = [1, 1]} : vector<8x128xf32> to vector<8x32xf32>
    %338 = vector.extract_strided_slice %336 {offsets = [0, 32], sizes = [8, 32], strides = [1, 1]} : vector<8x128xf32> to vector<8x32xf32>
    %339 = vector.extract_strided_slice %336 {offsets = [0, 64], sizes = [8, 32], strides = [1, 1]} : vector<8x128xf32> to vector<8x32xf32>
    %340 = vector.extract_strided_slice %336 {offsets = [0, 96], sizes = [8, 32], strides = [1, 1]} : vector<8x128xf32> to vector<8x32xf32>
    %341 = arith.mulf %338, %300 : vector<8x32xf32>
    %342 = arith.mulf %337, %339 : vector<8x32xf32>
    %343 = arith.addf %341, %342 : vector<8x32xf32>
    %344 = math.tanh %343 : vector<8x32xf32>
    %345 = arith.mulf %340, %344 : vector<8x32xf32>
    %346 = arith.select %304, %345, %299 : vector<8x32xi1>, vector<8x32xf32>
    %347 = arith.select %304, %343, %300 : vector<8x32xi1>, vector<8x32xf32>
    %c7_i32 = arith.constant 7 : i32
    %348 = vector.broadcast %c7_i32 : i32 to vector<8x1xi32>
    %349 = arith.cmpi slt, %348, %0 : vector<8x1xi32>
    %350 = vector.shape_cast %349 : vector<8x1xi1> to vector<8x1xi1>
    %351 = vector.broadcast %350 : vector<8x1xi1> to vector<8x32xi1>
    %352 = arith.index_cast %c7_i32 : i32 to index
    %c0_76 = arith.constant 0 : index
    %c0_77 = arith.constant 0 : index
    %353 = vector.load %arg2[%352, %c0_76, %c0_77] : memref<8x8x128xf32, #tpu.memory_space<vmem>>, vector<1x8x128xf32>
    %354 = vector.shape_cast %353 : vector<1x8x128xf32> to vector<8x128xf32>
    %cst_78 = arith.constant dense<0.000000e+00> : vector<8x128xf32>
    %355 = tpu.matmul %325, %8, %cst_78 {dimension_numbers = #tpu.dot_dimension_numbers<[1], [0], [0], [1], [0, 0, 1, 1], [], []>} : vector<8x32xf32>, vector<32x128xf32>, vector<8x128xf32> -> vector<8x128xf32>
    %356 = arith.addf %354, %355 : vector<8x128xf32>
    %357 = math.tanh %356 : vector<8x128xf32>
    %cst_79 = arith.constant 5.000000e-01 : f32
    %358 = vector.broadcast %cst_79 : f32 to vector<8x128xf32>
    %359 = arith.mulf %358, %357 : vector<8x128xf32>
    %cst_80 = arith.constant 5.000000e-01 : f32
    %360 = vector.broadcast %cst_80 : f32 to vector<8x128xf32>
    %361 = arith.addf %359, %360 : vector<8x128xf32>
    %362 = arith.select %6, %357, %361 : vector<8x128xi1>, vector<8x128xf32>
    %363 = vector.extract_strided_slice %362 {offsets = [0, 0], sizes = [8, 32], strides = [1, 1]} : vector<8x128xf32> to vector<8x32xf32>
    %364 = vector.extract_strided_slice %362 {offsets = [0, 32], sizes = [8, 32], strides = [1, 1]} : vector<8x128xf32> to vector<8x32xf32>
    %365 = vector.extract_strided_slice %362 {offsets = [0, 64], sizes = [8, 32], strides = [1, 1]} : vector<8x128xf32> to vector<8x32xf32>
    %366 = vector.extract_strided_slice %362 {offsets = [0, 96], sizes = [8, 32], strides = [1, 1]} : vector<8x128xf32> to vector<8x32xf32>
    %367 = arith.mulf %364, %326 : vector<8x32xf32>
    %368 = arith.mulf %363, %365 : vector<8x32xf32>
    %369 = arith.addf %367, %368 : vector<8x32xf32>
    %370 = math.tanh %369 : vector<8x32xf32>
    %371 = arith.mulf %366, %370 : vector<8x32xf32>
    %372 = arith.select %351, %371, %325 : vector<8x32xi1>, vector<8x32xf32>
    %373 = arith.select %351, %369, %326 : vector<8x32xi1>, vector<8x32xf32>
    %cst_81 = arith.constant dense<0.000000e+00> : vector<8x128xf32>
    %374 = tpu.matmul %372, %12, %cst_81 {dimension_numbers = #tpu.dot_dimension_numbers<[1], [0], [0], [1], [0, 0, 1, 1], [], []>} : vector<8x32xf32>, vector<32x128xf32>, vector<8x128xf32> -> vector<8x128xf32>
    %cst_82 = arith.constant dense<0.000000e+00> : vector<8x128xf32>
    %375 = tpu.matmul %346, %10, %cst_82 {dimension_numbers = #tpu.dot_dimension_numbers<[1], [0], [0], [1], [0, 0, 1, 1], [], []>} : vector<8x32xf32>, vector<32x128xf32>, vector<8x128xf32> -> vector<8x128xf32>
    %376 = arith.addf %374, %375 : vector<8x128xf32>
    %377 = arith.addf %376, %16 : vector<8x128xf32>
    %378 = math.tanh %377 : vector<8x128xf32>
    %cst_83 = arith.constant 5.000000e-01 : f32
    %379 = vector.broadcast %cst_83 : f32 to vector<8x128xf32>
    %380 = arith.mulf %379, %378 : vector<8x128xf32>
    %cst_84 = arith.constant 5.000000e-01 : f32
    %381 = vector.broadcast %cst_84 : f32 to vector<8x128xf32>
    %382 = arith.addf %380, %381 : vector<8x128xf32>
    %383 = arith.select %6, %378, %382 : vector<8x128xi1>, vector<8x128xf32>
    %384 = vector.extract_strided_slice %383 {offsets = [0, 0], sizes = [8, 32], strides = [1, 1]} : vector<8x128xf32> to vector<8x32xf32>
    %385 = vector.extract_strided_slice %383 {offsets = [0, 32], sizes = [8, 32], strides = [1, 1]} : vector<8x128xf32> to vector<8x32xf32>
    %386 = vector.extract_strided_slice %383 {offsets = [0, 64], sizes = [8, 32], strides = [1, 1]} : vector<8x128xf32> to vector<8x32xf32>
    %387 = vector.extract_strided_slice %383 {offsets = [0, 96], sizes = [8, 32], strides = [1, 1]} : vector<8x128xf32> to vector<8x32xf32>
    %388 = arith.mulf %385, %347 : vector<8x32xf32>
    %389 = arith.mulf %384, %386 : vector<8x32xf32>
    %390 = arith.addf %388, %389 : vector<8x32xf32>
    %391 = math.tanh %390 : vector<8x32xf32>
    %392 = arith.mulf %387, %391 : vector<8x32xf32>
    %393 = arith.select %351, %392, %346 : vector<8x32xi1>, vector<8x32xf32>
    %394 = arith.select %351, %390, %347 : vector<8x32xi1>, vector<8x32xf32>
    %c8_i32 = arith.constant 8 : i32
    %cst_85 = arith.constant 0.000000e+00 : f32
    %395 = vector.broadcast %cst_85 : f32 to vector<8x32xf32>
    %396 = arith.maximumf %393, %395 : vector<8x32xf32>
    %c0_86 = arith.constant 0 : index
    %c0_87 = arith.constant 0 : index
    %397 = vector.load %arg6[%c0_86, %c0_87] : memref<32x128xf32, #tpu.memory_space<vmem>>, vector<32x128xf32>
    %cst_88 = arith.constant dense<0.000000e+00> : vector<8x128xf32>
    %398 = tpu.matmul %396, %397, %cst_88 {dimension_numbers = #tpu.dot_dimension_numbers<[1], [0], [0], [1], [0, 0, 1, 1], [], []>} : vector<8x32xf32>, vector<32x128xf32>, vector<8x128xf32> -> vector<8x128xf32>
    %c0_89 = arith.constant 0 : index
    %c0_90 = arith.constant 0 : index
    %399 = vector.load %arg7[%c0_89, %c0_90] : memref<1x128xf32, #tpu.memory_space<vmem>>, vector<1x128xf32>
    %400 = vector.broadcast %399 : vector<1x128xf32> to vector<8x128xf32>
    %401 = arith.addf %398, %400 : vector<8x128xf32>
    %c0_91 = arith.constant 0 : index
    %c0_92 = arith.constant 0 : index
    %402 = vector.load %arg8[%c0_91, %c0_92] : memref<8x128xf32, #tpu.memory_space<vmem>>, vector<8x128xf32>
    tpu.vector_store %arg8[%c0_91, %c0_92], %401 {strides = array<i32>} : memref<8x128xf32, #tpu.memory_space<vmem>>, vector<8x128xf32>,
    return
  }
  func.func @transform_0(%arg0: i32) -> (i32, i32) {
    %c0_i32 = arith.constant 0 : i32
    %c0_i32_0 = arith.constant 0 : i32
    %c0_i32_1 = arith.constant 0 : i32
    return %c0_i32, %c0_i32_0 : i32, i32
  }
  func.func @transform_1(%arg0: i32) -> (i32, i32, i32) {
    %c0_i32 = arith.constant 0 : i32
    %c0_i32_0 = arith.constant 0 : i32
    %c0_i32_1 = arith.constant 0 : i32
    %c0_i32_2 = arith.constant 0 : i32
    return %c0_i32, %c0_i32_0, %c0_i32_1 : i32, i32, i32
  }
  func.func @transform_2(%arg0: i32) -> (i32, i32, i32) {
    %c0_i32 = arith.constant 0 : i32
    %c0_i32_0 = arith.constant 0 : i32
    %c0_i32_1 = arith.constant 0 : i32
    %c0_i32_2 = arith.constant 0 : i32
    return %c0_i32, %c0_i32_0, %c0_i32_1 : i32, i32, i32
  }
  func.func @transform_3(%arg0: i32) -> (i32, i32, i32) {
    %c0_i32 = arith.constant 0 : i32
    %c0_i32_0 = arith.constant 0 : i32
    %c0_i32_1 = arith.constant 0 : i32
    %c0_i32_2 = arith.constant 0 : i32
    return %c0_i32, %c0_i32_0, %c0_i32_1 : i32, i32, i32
  }
  func.func @transform_4(%arg0: i32) -> (i32, i32, i32) {
    %c0_i32 = arith.constant 0 : i32
    %c0_i32_0 = arith.constant 0 : i32
    %c0_i32_1 = arith.constant 0 : i32
    %c0_i32_2 = arith.constant 0 : i32
    return %c0_i32, %c0_i32_0, %c0_i32_1 : i32, i32, i32
  }
  func.func @transform_5(%arg0: i32) -> (i32, i32) {
    %c0_i32 = arith.constant 0 : i32
    %c0_i32_0 = arith.constant 0 : i32
    %c0_i32_1 = arith.constant 0 : i32
    return %c0_i32, %c0_i32_0 : i32, i32
  }
  func.func @transform_6(%arg0: i32) -> (i32, i32) {
    %c0_i32 = arith.constant 0 : i32
    %c0_i32_0 = arith.constant 0 : i32
    %c0_i32_1 = arith.constant 0 : i32
    return %c0_i32, %c0_i32_0 : i32, i32
  }
  func.func @transform_7(%arg0: i32) -> (i32, i32) {
    %c0_i32 = arith.constant 0 : i32
    %c0_i32_0 = arith.constant 0 : i32
    %c0_i32_1 = arith.constant 0 : i32
    return %c0_i32, %c0_i32_0 : i32, i32
  }
}

</mosaic_0001>

<llo_original>
// kernel: rtlstm_forward.1
$region0: #{rtlstm_forward.1}
  #allocation0 [shape = 'u32[]', space=smem, size = 0x4, offset = 0x4, fixed_abs, tag = 'smem constant byte address 0x4 - core index']
  #allocation1 [shape = 'u32[144,128]{1,0:T(1,128)}', space=vmem, size = 0x12000, scoped, tag = 'internal scratch']
  %s0 = inlined_call_operand.vmem [shape: s32[8,1], index: 0, kind: input, shape index: {}]
  %s1 = inlined_call_operand.vmem [shape: f32[8,8,128], index: 1, kind: input, shape index: {}]
  %s2 = inlined_call_operand.vmem [shape: f32[2,32,128], index: 2, kind: input, shape index: {}]
  %s3 = inlined_call_operand.vmem [shape: f32[1,32,128], index: 3, kind: input, shape index: {}]
  %s4 = inlined_call_operand.vmem [shape: f32[1,1,128], index: 4, kind: input, shape index: {}]
  %s5 = inlined_call_operand.vmem [shape: f32[32,128], index: 5, kind: input, shape index: {}]
  %s6 = inlined_call_operand.vmem [shape: f32[1,128], index: 6, kind: input, shape index: {}]
  %s7 = inlined_call_operand.vmem [shape: f32[8,128], index: 7, kind: output, shape index: {}]
  %s8 = sld [smem:[#allocation0]]
  $region38: #{rtlstm_forward.1} parent=0
    _
  %s10 = ssub.s32 1, %s8
  %s11 = scalar_select 0, %s10, %s8
  // Predicated region
  $region2: #{rtlstm_forward.1} parent=0 // pred_check
    _
  $region3: #{rtlstm_forward.1} parent=0 // pred_check_branch
    %13 = sbr.rel (0) target = $region5
  $region4: #{rtlstm_forward.1} parent=0 // pred_region
    _
  $region5: #{rtlstm_forward.1} parent=0 // pred_fallthru
    _
  // Predicated region
  $region6: #{rtlstm_forward.1} parent=0 // pred_check
    _
  $region7: #{rtlstm_forward.1} parent=0 // pred_check_branch
    %15 = sbr.rel (0) target = $region9
  $region8: #{rtlstm_forward.1} parent=0 // pred_region
    _
  $region9: #{rtlstm_forward.1} parent=0 // pred_fallthru
    _
  // Predicated region
  $region10: #{rtlstm_forward.1} parent=0 // pred_check
    _
  $region11: #{rtlstm_forward.1} parent=0 // pred_check_branch
    %17 = sbr.rel (0) target = $region13
  $region12: #{rtlstm_forward.1} parent=0 // pred_region
    _
  $region13: #{rtlstm_forward.1} parent=0 // pred_fallthru
    _
  // Predicated region
  $region14: #{rtlstm_forward.1} parent=0 // pred_check
    _
  $region15: #{rtlstm_forward.1} parent=0 // pred_check_branch
    %19 = sbr.rel (0) target = $region17
  $region16: #{rtlstm_forward.1} parent=0 // pred_region
    _
  $region17: #{rtlstm_forward.1} parent=0 // pred_fallthru
    _
  // Predicated region
  $region18: #{rtlstm_forward.1} parent=0 // pred_check
    _
  $region19: #{rtlstm_forward.1} parent=0 // pred_check_branch
    %21 = sbr.rel (0) target = $region21
  $region20: #{rtlstm_forward.1} parent=0 // pred_region
    _
  $region21: #{rtlstm_forward.1} parent=0 // pred_fallthru
    _
  // Predicated region
  $region22: #{rtlstm_forward.1} parent=0 // pred_check
    _
  $region23: #{rtlstm_forward.1} parent=0 // pred_check_branch
    %23 = sbr.rel (0) target = $region25
  $region24: #{rtlstm_forward.1} parent=0 // pred_region
    _
  $region25: #{rtlstm_forward.1} parent=0 // pred_fallthru
    _
  // Predicated region
  $region26: #{rtlstm_forward.1} parent=0 // pred_check
    _
  $region27: #{rtlstm_forward.1} parent=0 // pred_check_branch
    %25 = sbr.rel (0) target = $region29
  $region28: #{rtlstm_forward.1} parent=0 // pred_region
    _
  $region29: #{rtlstm_forward.1} parent=0 // pred_fallthru
    _
  %v26 = vld [vmem:[%s0] sm:$0xff]
  %v27 = vlaneseq
  %v28 = vand.u32 %v27, 127
  %vm29 = vcmp.ge.s32.totalorder %v28, 64
  %vm30 = vcmp.lt.s32.totalorder %v28, 96
  %vm31 = vmand %vm29, %vm30
  %v32 = vld [vmem:[%s2] sm:$0xff]
  %v33 = vld [vmem:[%s2 + $0x8] sm:$0xff]
  %v34 = vld [vmem:[%s2 + $0x10] sm:$0xff]
  %v35 = vld [vmem:[%s2 + $0x18] sm:$0xff]
  %s36 = scalar_lea.vmem %s2, 32
  %v37 = vld [vmem:[%s36] sm:$0xff]
  %v38 = vld [vmem:[%s36 + $0x8] sm:$0xff]
  %v39 = vld [vmem:[%s36 + $0x10] sm:$0xff]
  %v40 = vld [vmem:[%s36 + $0x18] sm:$0xff]
  %v41 = vld [vmem:[%s3] sm:$0xff]
  %v42 = vld [vmem:[%s3 + $0x8] sm:$0xff]
  %v43 = vld [vmem:[%s3 + $0x10] sm:$0xff]
  %v44 = vld [vmem:[%s3 + $0x18] sm:$0xff]
  %v45 = vld [vmem:[%s4] sm:$0x1]
  %v47 = vlaneseq
  %v48 = vshrl.u32 %v47, 7
  %v49 = vsub.s32 0, %v48
  %v50 = vrot.slane %v45, %v49
  %vm52 = vcmp.gt.s32.totalorder %v26, 0
  %v53 = vsel %vm52, 1, 0
  %54 = vset.pattern.permute.xlu0 0
  %55 = vperm.xlu0 %54, %v53
  %v56 = vpop.permute.xlu0 %55
  %vm57 = vcmp.eq.s32.totalorder %v56, 1
  %v58 = vld [vmem:[%s1] sm:$0xff]
  %vm59 = vcmask 261120
  %v61 = vsel %vm59, 0.0, 0
  %63 = vmatprep.subr.mxu0 0.0
  %64 = vmatpush1.msra.mxu0 0.0
  %65 = vmatprep.subr.mxu0 0.0
  %66 = vmatpush1.msra.mxu0 0.0
  %67 = vmatprep.subr.mxu0 0.0
  %68 = vmatpush1.msra.mxu0 0.0
  %69 = vmatprep.subr.mxu0 0.0
  %70 = vmatpush1.msra.mxu0 0.0
  %71 = vmatprep.subr.mxu0 0.0
  %72 = vmatpush1.msra.mxu0 0.0
  %73 = vmatprep.subr.mxu0 0.0
  %74 = vmatpush1.msra.mxu0 0.0
  %75 = vmatprep.subr.mxu0 0.0
  %76 = vmatpush1.msra.mxu0 0.0
  %77 = vmatprep.subr.mxu0 0.0
  %78 = vmatpush1.msra.mxu0 0.0
  %79 = vmatprep.subr.mxu0 0.0
  %80 = vmatpush1.msra.mxu0 0.0
  %81 = vmatprep.subr.mxu0 0.0
  %82 = vmatpush1.msra.mxu0 0.0
  %83 = vmatprep.subr.mxu0 0.0
  %84 = vmatpush1.msra.mxu0 0.0
  %85 = vmatprep.subr.mxu0 0.0
  %86 = vmatpush1.msra.mxu0 0.0
  %87 = vmatprep.subr.mxu0 0.0
  %88 = vmatpush1.msra.mxu0 %v35
  %89 = vmatprep.subr.mxu0 0.0
  %90 = vmatpush1.msra.mxu0 %v34
  %91 = vmatprep.subr.mxu0 0.0
  %92 = vmatpush1.msra.mxu0 %v33
  %93 = vmatprep.subr.mxu0 0.0
  %94 = vmatpush1.msra.mxu0 %v32
  %95 = vmatprep.subr.mxu0 0.0
  %96 = vmatpush2.msra.mxu0 0.0
  %97 = vmatprep.subr.mxu0 0.0
  %98 = vmatpush2.msra.mxu0 0.0
  %99 = vmatprep.subr.mxu0 0.0
  %100 = vmatpush2.msra.mxu0 0.0
  %101 = vmatprep.subr.mxu0 0.0
  %102 = vmatpush2.msra.mxu0 0.0
  %103 = vmatprep.subr.mxu0 0.0
  %104 = vmatpush2.msra.mxu0 0.0
  %105 = vmatprep.subr.mxu0 0.0
  %106 = vmatpush2.msra.mxu0 0.0
  %107 = vmatprep.subr.mxu0 0.0
  %108 = vmatpush2.msra.mxu0 0.0
  %109 = vmatprep.subr.mxu0 0.0
  %110 = vmatpush2.msra.mxu0 0.0
  %111 = vmatprep.subr.mxu0 0.0
  %112 = vmatpush2.msra.mxu0 0.0
  %113 = vmatprep.subr.mxu0 0.0
  %114 = vmatpush2.msra.mxu0 0.0
  %115 = vmatprep.subr.mxu0 0.0
  %116 = vmatpush2.msra.mxu0 0.0
  %117 = vmatprep.subr.mxu0 0.0
  %118 = vmatpush2.msra.mxu0 0.0
  %119 = vmatprep.subr.mxu0 0.0
  %120 = vmatpush2.msra.mxu0 0.0
  %121 = vmatprep.subr.mxu0 0.0
  %122 = vmatpush2.msra.mxu0 0.0
  %123 = vmatprep.subr.mxu0 0.0
  %124 = vmatpush2.msra.mxu0 0.0
  %125 = vmatprep.subr.mxu0 0.0
  %126 = vmatpush2.msra.mxu0 0.0
  %127 = vmatprep.mubr.f32.mxu0 0.0
  %128 = vmatmul.mubr.f32.gmra.mxu0 %v61
  %v129 = vpop.f32.mrf.mxu0
  %v130 = vadd.f32 0.0, %v129
  %v131 = vpop.f32.mrf.mxu0
  %132 = vdwg.mxu0
  %v133 = vadd.f32 %v58, %v130
  %v134 = vtanh.pop %v133
  %v135 = vmul.f32 %v134, 0.5
  %v136 = vadd.f32 %v135, 0.5
  %v137 = vsel %vm31, %v134, %v136
  %v138 = vmul.f32 %v137, 0.0
  %140 = vrot.lane.b32.xlu0 %v137, 64
  %v141 = vpop.permute.xlu0 %140
  %v143 = vmul.f32 %v137, %v141
  %145 = vrot.lane.b32.xlu0 %v143, 32
  %v146 = vpop.permute.xlu0 %145
  %v148 = vadd.f32 %v138, %v146
  %v149 = vtanh.pop %v148
  %151 = vrot.lane.b32.xlu0 %v149, 64
  %v152 = vpop.permute.xlu0 %151
  %v154 = vmul.f32 %v137, %v152
  %v155 = vsel %vm57, %v154, 0.0
  %v156 = vsel %vm57, %v148, 0.0
  %157 = vmatprep.subr.mxu0 0.0
  %158 = vmatpush1.msra.mxu0 0.0
  %159 = vmatprep.subr.mxu0 0.0
  %160 = vmatpush1.msra.mxu0 0.0
  %161 = vmatprep.subr.mxu0 0.0
  %162 = vmatpush1.msra.mxu0 0.0
  %163 = vmatprep.subr.mxu0 0.0
  %164 = vmatpush1.msra.mxu0 0.0
  %165 = vmatprep.subr.mxu0 0.0
  %166 = vmatpush1.msra.mxu0 0.0
  %167 = vmatprep.subr.mxu0 0.0
  %168 = vmatpush1.msra.mxu0 0.0
  %169 = vmatprep.subr.mxu0 0.0
  %170 = vmatpush1.msra.mxu0 0.0
  %171 = vmatprep.subr.mxu0 0.0
  %172 = vmatpush1.msra.mxu0 0.0
  %173 = vmatprep.subr.mxu0 0.0
  %174 = vmatpush1.msra.mxu0 0.0
  %175 = vmatprep.subr.mxu0 0.0
  %176 = vmatpush1.msra.mxu0 0.0
  %177 = vmatprep.subr.mxu0 0.0
  %178 = vmatpush1.msra.mxu0 0.0
  %179 = vmatprep.subr.mxu0 0.0
  %180 = vmatpush1.msra.mxu0 0.0
  %181 = vmatprep.subr.mxu0 0.0
  %182 = vmatpush1.msra.mxu0 %v40
  %183 = vmatprep.subr.mxu0 0.0
  %184 = vmatpush1.msra.mxu0 %v39
  %185 = vmatprep.subr.mxu0 0.0
  %186 = vmatpush1.msra.mxu0 %v38
  %187 = vmatprep.subr.mxu0 0.0
  %188 = vmatpush1.msra.mxu0 %v37
  %189 = vmatprep.subr.mxu0 0.0
  %190 = vmatpush2.msra.mxu0 0.0
  %191 = vmatprep.subr.mxu0 0.0
  %192 = vmatpush2.msra.mxu0 0.0
  %193 = vmatprep.subr.mxu0 0.0
  %194 = vmatpush2.msra.mxu0 0.0
  %195 = vmatprep.subr.mxu0 0.0
  %196 = vmatpush2.msra.mxu0 0.0
  %197 = vmatprep.subr.mxu0 0.0
  %198 = vmatpush2.msra.mxu0 0.0
  %199 = vmatprep.subr.mxu0 0.0
  %200 = vmatpush2.msra.mxu0 0.0
  %201 = vmatprep.subr.mxu0 0.0
  %202 = vmatpush2.msra.mxu0 0.0
  %203 = vmatprep.subr.mxu0 0.0
  %204 = vmatpush2.msra.mxu0 0.0
  %205 = vmatprep.subr.mxu0 0.0
  %206 = vmatpush2.msra.mxu0 0.0
  %207 = vmatprep.subr.mxu0 0.0
  %208 = vmatpush2.msra.mxu0 0.0
  %209 = vmatprep.subr.mxu0 0.0
  %210 = vmatpush2.msra.mxu0 0.0
  %211 = vmatprep.subr.mxu0 0.0
  %212 = vmatpush2.msra.mxu0 0.0
  %213 = vmatprep.subr.mxu0 0.0
  %214 = vmatpush2.msra.mxu0 0.0
  %215 = vmatprep.subr.mxu0 0.0
  %216 = vmatpush2.msra.mxu0 0.0
  %217 = vmatprep.subr.mxu0 0.0
  %218 = vmatpush2.msra.mxu0 0.0
  %219 = vmatprep.subr.mxu0 0.0
  %220 = vmatpush2.msra.mxu0 0.0
  %221 = vmatprep.mubr.f32.mxu0 0.0
  %222 = vmatmul.mubr.f32.gmra.mxu0 %v61
  %v223 = vpop.f32.mrf.mxu0
  %v224 = vadd.f32 0.0, %v223
  %v225 = vpop.f32.mrf.mxu0
  %226 = vdwg.mxu0
  %228 = vrot.lane.b32.xlu0 %v155, 32
  %v229 = vpop.permute.xlu0 %228
  %v230 = vsel %vm59, %v229, 0
  %232 = vmatprep.subr.mxu0 0.0
  %233 = vmatpush1.msra.mxu0 0.0
  %234 = vmatprep.subr.mxu0 0.0
  %235 = vmatpush1.msra.mxu0 0.0
  %236 = vmatprep.subr.mxu0 0.0
  %237 = vmatpush1.msra.mxu0 0.0
  %238 = vmatprep.subr.mxu0 0.0
  %239 = vmatpush1.msra.mxu0 0.0
  %240 = vmatprep.subr.mxu0 0.0
  %241 = vmatpush1.msra.mxu0 0.0
  %242 = vmatprep.subr.mxu0 0.0
  %243 = vmatpush1.msra.mxu0 0.0
  %244 = vmatprep.subr.mxu0 0.0
  %245 = vmatpush1.msra.mxu0 0.0
  %246 = vmatprep.subr.mxu0 0.0
  %247 = vmatpush1.msra.mxu0 0.0
  %248 = vmatprep.subr.mxu0 0.0
  %249 = vmatpush1.msra.mxu0 0.0
  %250 = vmatprep.subr.mxu0 0.0
  %251 = vmatpush1.msra.mxu0 0.0
  %252 = vmatprep.subr.mxu0 0.0
  %253 = vmatpush1.msra.mxu0 0.0
  %254 = vmatprep.subr.mxu0 0.0
  %255 = vmatpush1.msra.mxu0 0.0
  %256 = vmatprep.subr.mxu0 0.0
  %257 = vmatpush1.msra.mxu0 %v44
  %258 = vmatprep.subr.mxu0 0.0
  %259 = vmatpush1.msra.mxu0 %v43
  %260 = vmatprep.subr.mxu0 0.0
  %261 = vmatpush1.msra.mxu0 %v42
  %262 = vmatprep.subr.mxu0 0.0
  %263 = vmatpush1.msra.mxu0 %v41
  %264 = vmatprep.subr.mxu0 0.0
  %265 = vmatpush2.msra.mxu0 0.0
  %266 = vmatprep.subr.mxu0 0.0
  %267 = vmatpush2.msra.mxu0 0.0
  %268 = vmatprep.subr.mxu0 0.0
  %269 = vmatpush2.msra.mxu0 0.0
  %270 = vmatprep.subr.mxu0 0.0
  %271 = vmatpush2.msra.mxu0 0.0
  %272 = vmatprep.subr.mxu0 0.0
  %273 = vmatpush2.msra.mxu0 0.0
  %274 = vmatprep.subr.mxu0 0.0
  %275 = vmatpush2.msra.mxu0 0.0
  %276 = vmatprep.subr.mxu0 0.0
  %277 = vmatpush2.msra.mxu0 0.0
  %278 = vmatprep.subr.mxu0 0.0
  %279 = vmatpush2.msra.mxu0 0.0
  %280 = vmatprep.subr.mxu0 0.0
  %281 = vmatpush2.msra.mxu0 0.0
  %282 = vmatprep.subr.mxu0 0.0
  %283 = vmatpush2.msra.mxu0 0.0
  %284 = vmatprep.subr.mxu0 0.0
  %285 = vmatpush2.msra.mxu0 0.0
  %286 = vmatprep.subr.mxu0 0.0
  %287 = vmatpush2.msra.mxu0 0.0
  %288 = vmatprep.subr.mxu0 0.0
  %289 = vmatpush2.msra.mxu0 0.0
  %290 = vmatprep.subr.mxu0 0.0
  %291 = vmatpush2.msra.mxu0 0.0
  %292 = vmatprep.subr.mxu0 0.0
  %293 = vmatpush2.msra.mxu0 0.0
  %294 = vmatprep.subr.mxu0 0.0
  %295 = vmatpush2.msra.mxu0 0.0
  %296 = vmatprep.mubr.f32.mxu0 0.0
  %297 = vmatmul.mubr.f32.gmra.mxu0 %v230
  %v298 = vpop.f32.mrf.mxu0
  %v299 = vadd.f32 %v224, %v298
  %v300 = vpop.f32.mrf.mxu0
  %301 = vdwg.mxu0
  %v302 = vadd.f32 %v299, %v50
  %v303 = vtanh.pop %v302
  %v304 = vmul.f32 %v303, 0.5
  %v305 = vadd.f32 %v304, 0.5
  %v306 = vsel %vm31, %v303, %v305
  %v307 = vmul.f32 %v306, 0.0
  %309 = vrot.lane.b32.xlu0 %v306, 64
  %v310 = vpop.permute.xlu0 %309
  %v312 = vmul.f32 %v306, %v310
  %314 = vrot.lane.b32.xlu0 %v312, 32
  %v315 = vpop.permute.xlu0 %314
  %v317 = vadd.f32 %v307, %v315
  %v318 = vtanh.pop %v317
  %320 = vrot.lane.b32.xlu0 %v318, 64
  %v321 = vpop.permute.xlu0 %320
  %v323 = vmul.f32 %v306, %v321
  %v324 = vsel %vm57, %v323, 0.0
  %v325 = vsel %vm57, %v317, 0.0
  %vm326 = vcmp.gt.s32.totalorder %v26, 1
  %v327 = vsel %vm326, 1, 0
  %328 = vset.pattern.permute.xlu0 0
  %329 = vperm.xlu0 %328, %v327
  %v330 = vpop.permute.xlu0 %329
  %vm331 = vcmp.eq.s32.totalorder %v330, 1
  %s332 = scalar_lea.vmem %s1, 8
  %v333 = vld [vmem:[%s332] sm:$0xff]
  %334 = vmatprep.subr.mxu0 0.0
  %335 = vmatpush1.msra.mxu0 0.0
  %336 = vmatprep.subr.mxu0 0.0
  %337 = vmatpush1.msra.mxu0 0.0
  %338 = vmatprep.subr.mxu0 0.0
  %339 = vmatpush1.msra.mxu0 0.0
  %340 = vmatprep.subr.mxu0 0.0
  %341 = vmatpush1.msra.mxu0 0.0
  %342 = vmatprep.subr.mxu0 0.0
  %343 = vmatpush1.msra.mxu0 0.0
  %344 = vmatprep.subr.mxu0 0.0
  %345 = vmatpush1.msra.mxu0 0.0
  %346 = vmatprep.subr.mxu0 0.0
  %347 = vmatpush1.msra.mxu0 0.0
  %348 = vmatprep.subr.mxu0 0.0
  %349 = vmatpush1.msra.mxu0 0.0
  %350 = vmatprep.subr.mxu0 0.0
  %351 = vmatpush1.msra.mxu0 0.0
  %352 = vmatprep.subr.mxu0 0.0
  %353 = vmatpush1.msra.mxu0 0.0
  %354 = vmatprep.subr.mxu0 0.0
  %355 = vmatpush1.msra.mxu0 0.0
  %356 = vmatprep.subr.mxu0 0.0
  %357 = vmatpush1.msra.mxu0 0.0
  %358 = vmatprep.subr.mxu0 0.0
  %359 = vmatpush1.msra.mxu0 %v35
  %360 = vmatprep.subr.mxu0 0.0
  %361 = vmatpush1.msra.mxu0 %v34
  %362 = vmatprep.subr.mxu0 0.0
  %363 = vmatpush1.msra.mxu0 %v33
  %364 = vmatprep.subr.mxu0 0.0
  %365 = vmatpush1.msra.mxu0 %v32
  %366 = vmatprep.subr.mxu0 0.0
  %367 = vmatpush2.msra.mxu0 0.0
  %368 = vmatprep.subr.mxu0 0.0
  %369 = vmatpush2.msra.mxu0 0.0
  %370 = vmatprep.subr.mxu0 0.0
  %371 = vmatpush2.msra.mxu0 0.0
  %372 = vmatprep.subr.mxu0 0.0
  %373 = vmatpush2.msra.mxu0 0.0
  %374 = vmatprep.subr.mxu0 0.0
  %375 = vmatpush2.msra.mxu0 0.0
  %376 = vmatprep.subr.mxu0 0.0
  %377 = vmatpush2.msra.mxu0 0.0
  %378 = vmatprep.subr.mxu0 0.0
  %379 = vmatpush2.msra.mxu0 0.0
  %380 = vmatprep.subr.mxu0 0.0
  %381 = vmatpush2.msra.mxu0 0.0
  %382 = vmatprep.subr.mxu0 0.0
  %383 = vmatpush2.msra.mxu0 0.0
  %384 = vmatprep.subr.mxu0 0.0
  %385 = vmatpush2.msra.mxu0 0.0
  %386 = vmatprep.subr.mxu0 0.0
  %387 = vmatpush2.msra.mxu0 0.0
  %388 = vmatprep.subr.mxu0 0.0
  %389 = vmatpush2.msra.mxu0 0.0
  %390 = vmatprep.subr.mxu0 0.0
  %391 = vmatpush2.msra.mxu0 0.0
  %392 = vmatprep.subr.mxu0 0.0
  %393 = vmatpush2.msra.mxu0 0.0
  %394 = vmatprep.subr.mxu0 0.0
  %395 = vmatpush2.msra.mxu0 0.0
  %396 = vmatprep.subr.mxu0 0.0
  %397 = vmatpush2.msra.mxu0 0.0
  %398 = vmatprep.mubr.f32.mxu0 0.0
  %399 = vmatmul.mubr.f32.gmra.mxu0 %v230
  %v400 = vpop.f32.mrf.mxu0
  %v401 = vadd.f32 0.0, %v400
  %v402 = vpop.f32.mrf.mxu0
  %403 = vdwg.mxu0
  %v404 = vadd.f32 %v333, %v401
  %v405 = vtanh.pop %v404
  %v406 = vmul.f32 %v405, 0.5
  %v407 = vadd.f32 %v406, 0.5
  %v408 = vsel %vm31, %v405, %v407
  %v409 = vmul.f32 %v408, %v156
  %411 = vrot.lane.b32.xlu0 %v408, 64
  %v412 = vpop.permute.xlu0 %411
  %v414 = vmul.f32 %v408, %v412
  %416 = vrot.lane.b32.xlu0 %v414, 32
  %v417 = vpop.permute.xlu0 %416
  %v419 = vadd.f32 %v409, %v417
  %v420 = vtanh.pop %v419
  %422 = vrot.lane.b32.xlu0 %v420, 64
  %v423 = vpop.permute.xlu0 %422
  %v425 = vmul.f32 %v408, %v423
  %v426 = vsel %vm331, %v425, %v155
  %v427 = vsel %vm331, %v419, %v156
  %429 = vrot.lane.b32.xlu0 %v324, 32
  %v430 = vpop.permute.xlu0 %429
  %v431 = vsel %vm59, %v430, 0
  %433 = vmatprep.subr.mxu0 0.0
  %434 = vmatpush1.msra.mxu0 0.0
  %435 = vmatprep.subr.mxu0 0.0
  %436 = vmatpush1.msra.mxu0 0.0
  %437 = vmatprep.subr.mxu0 0.0
  %438 = vmatpush1.msra.mxu0 0.0
  %439 = vmatprep.subr.mxu0 0.0
  %440 = vmatpush1.msra.mxu0 0.0
  %441 = vmatprep.subr.mxu0 0.0
  %442 = vmatpush1.msra.mxu0 0.0
  %443 = vmatprep.subr.mxu0 0.0
  %444 = vmatpush1.msra.mxu0 0.0
  %445 = vmatprep.subr.mxu0 0.0
  %446 = vmatpush1.msra.mxu0 0.0
  %447 = vmatprep.subr.mxu0 0.0
  %448 = vmatpush1.msra.mxu0 0.0
  %449 = vmatprep.subr.mxu0 0.0
  %450 = vmatpush1.msra.mxu0 0.0
  %451 = vmatprep.subr.mxu0 0.0
  %452 = vmatpush1.msra.mxu0 0.0
  %453 = vmatprep.subr.mxu0 0.0
  %454 = vmatpush1.msra.mxu0 0.0
  %455 = vmatprep.subr.mxu0 0.0
  %456 = vmatpush1.msra.mxu0 0.0
  %457 = vmatprep.subr.mxu0 0.0
  %458 = vmatpush1.msra.mxu0 %v40
  %459 = vmatprep.subr.mxu0 0.0
  %460 = vmatpush1.msra.mxu0 %v39
  %461 = vmatprep.subr.mxu0 0.0
  %462 = vmatpush1.msra.mxu0 %v38
  %463 = vmatprep.subr.mxu0 0.0
  %464 = vmatpush1.msra.mxu0 %v37
  %465 = vmatprep.subr.mxu0 0.0
  %466 = vmatpush2.msra.mxu0 0.0
  %467 = vmatprep.subr.mxu0 0.0
  %468 = vmatpush2.msra.mxu0 0.0
  %469 = vmatprep.subr.mxu0 0.0
  %470 = vmatpush2.msra.mxu0 0.0
  %471 = vmatprep.subr.mxu0 0.0
  %472 = vmatpush2.msra.mxu0 0.0
  %473 = vmatprep.subr.mxu0 0.0
  %474 = vmatpush2.msra.mxu0 0.0
  %475 = vmatprep.subr.mxu0 0.0
  %476 = vmatpush2.msra.mxu0 0.0
  %477 = vmatprep.subr.mxu0 0.0
  %478 = vmatpush2.msra.mxu0 0.0
  %479 = vmatprep.subr.mxu0 0.0
  %480 = vmatpush2.msra.mxu0 0.0
  %481 = vmatprep.subr.mxu0 0.0
  %482 = vmatpush2.msra.mxu0 0.0
  %483 = vmatprep.subr.mxu0 0.0
  %484 = vmatpush2.msra.mxu0 0.0
  %485 = vmatprep.subr.mxu0 0.0
  %486 = vmatpush2.msra.mxu0 0.0
  %487 = vmatprep.subr.mxu0 0.0
  %488 = vmatpush2.msra.mxu0 0.0
  %489 = vmatprep.subr.mxu0 0.0
  %490 = vmatpush2.msra.mxu0 0.0
  %491 = vmatprep.subr.mxu0 0.0
  %492 = vmatpush2.msra.mxu0 0.0
  %493 = vmatprep.subr.mxu0 0.0
  %494 = vmatpush2.msra.mxu0 0.0
  %495 = vmatprep.subr.mxu0 0.0
  %496 = vmatpush2.msra.mxu0 0.0
  %497 = vmatprep.mubr.f32.mxu0 0.0
  %498 = vmatmul.mubr.f32.gmra.mxu0 %v431
  %v499 = vpop.f32.mrf.mxu0
  %v500 = vadd.f32 0.0, %v499
  %v501 = vpop.f32.mrf.mxu0
  %502 = vdwg.mxu0
  %504 = vrot.lane.b32.xlu0 %v426, 32
  %v505 = vpop.permute.xlu0 %504
  %v506 = vsel %vm59, %v505, 0
  %508 = vmatprep.subr.mxu0 0.0
  %509 = vmatpush1.msra.mxu0 0.0
  %510 = vmatprep.subr.mxu0 0.0
  %511 = vmatpush1.msra.mxu0 0.0
  %512 = vmatprep.subr.mxu0 0.0
  %513 = vmatpush1.msra.mxu0 0.0
  %514 = vmatprep.subr.mxu0 0.0
  %515 = vmatpush1.msra.mxu0 0.0
  %516 = vmatprep.subr.mxu0 0.0
  %517 = vmatpush1.msra.mxu0 0.0
  %518 = vmatprep.subr.mxu0 0.0
  %519 = vmatpush1.msra.mxu0 0.0
  %520 = vmatprep.subr.mxu0 0.0
  %521 = vmatpush1.msra.mxu0 0.0
  %522 = vmatprep.subr.mxu0 0.0
  %523 = vmatpush1.msra.mxu0 0.0
  %524 = vmatprep.subr.mxu0 0.0
  %525 = vmatpush1.msra.mxu0 0.0
  %526 = vmatprep.subr.mxu0 0.0
  %527 = vmatpush1.msra.mxu0 0.0
  %528 = vmatprep.subr.mxu0 0.0
  %529 = vmatpush1.msra.mxu0 0.0
  %530 = vmatprep.subr.mxu0 0.0
  %531 = vmatpush1.msra.mxu0 0.0
  %532 = vmatprep.subr.mxu0 0.0
  %533 = vmatpush1.msra.mxu0 %v44
  %534 = vmatprep.subr.mxu0 0.0
  %535 = vmatpush1.msra.mxu0 %v43
  %536 = vmatprep.subr.mxu0 0.0
  %537 = vmatpush1.msra.mxu0 %v42
  %538 = vmatprep.subr.mxu0 0.0
  %539 = vmatpush1.msra.mxu0 %v41
  %540 = vmatprep.subr.mxu0 0.0
  %541 = vmatpush2.msra.mxu0 0.0
  %542 = vmatprep.subr.mxu0 0.0
  %543 = vmatpush2.msra.mxu0 0.0
  %544 = vmatprep.subr.mxu0 0.0
  %545 = vmatpush2.msra.mxu0 0.0
  %546 = vmatprep.subr.mxu0 0.0
  %547 = vmatpush2.msra.mxu0 0.0
  %548 = vmatprep.subr.mxu0 0.0
  %549 = vmatpush2.msra.mxu0 0.0
  %550 = vmatprep.subr.mxu0 0.0
  %551 = vmatpush2.msra.mxu0 0.0
  %552 = vmatprep.subr.mxu0 0.0
  %553 = vmatpush2.msra.mxu0 0.0
  %554 = vmatprep.subr.mxu0 0.0
  %555 = vmatpush2.msra.mxu0 0.0
  %556 = vmatprep.subr.mxu0 0.0
  %557 = vmatpush2.msra.mxu0 0.0
  %558 = vmatprep.subr.mxu0 0.0
  %559 = vmatpush2.msra.mxu0 0.0
  %560 = vmatprep.subr.mxu0 0.0
  %561 = vmatpush2.msra.mxu0 0.0
  %562 = vmatprep.subr.mxu0 0.0
  %563 = vmatpush2.msra.mxu0 0.0
  %564 = vmatprep.subr.mxu0 0.0
  %565 = vmatpush2.msra.mxu0 0.0
  %566 = vmatprep.subr.mxu0 0.0
  %567 = vmatpush2.msra.mxu0 0.0
  %568 = vmatprep.subr.mxu0 0.0
  %569 = vmatpush2.msra.mxu0 0.0
  %570 = vmatprep.subr.mxu0 0.0
  %571 = vmatpush2.msra.mxu0 0.0
  %572 = vmatprep.mubr.f32.mxu0 0.0
  %573 = vmatmul.mubr.f32.gmra.mxu0 %v506
  %v574 = vpop.f32.mrf.mxu0
  %v575 = vadd.f32 %v500, %v574
  %v576 = vpop.f32.mrf.mxu0
  %577 = vdwg.mxu0
  %v578 = vadd.f32 %v575, %v50
  %v579 = vtanh.pop %v578
  %v580 = vmul.f32 %v579, 0.5
  %v581 = vadd.f32 %v580, 0.5
  %v582 = vsel %vm31, %v579, %v581
  %v583 = vmul.f32 %v582, %v325
  %585 = vrot.lane.b32.xlu0 %v582, 64
  %v586 = vpop.permute.xlu0 %585
  %v588 = vmul.f32 %v582, %v586
  %590 = vrot.lane.b32.xlu0 %v588, 32
  %v591 = vpop.permute.xlu0 %590
  %v593 = vadd.f32 %v583, %v591
  %v594 = vtanh.pop %v593
  %596 = vrot.lane.b32.xlu0 %v594, 64
  %v597 = vpop.permute.xlu0 %596
  %v599 = vmul.f32 %v582, %v597
  %v600 = vsel %vm331, %v599, %v324
  %v601 = vsel %vm331, %v593, %v325
  %vm602 = vcmp.gt.s32.totalorder %v26, 2
  %v603 = vsel %vm602, 1, 0
  %604 = vset.pattern.permute.xlu0 0
  %605 = vperm.xlu0 %604, %v603
  %v606 = vpop.permute.xlu0 %605
  %vm607 = vcmp.eq.s32.totalorder %v606, 1
  %s608 = scalar_lea.vmem %s1, 16
  %v609 = vld [vmem:[%s608] sm:$0xff]
  %610 = vmatprep.subr.mxu0 0.0
  %611 = vmatpush1.msra.mxu0 0.0
  %612 = vmatprep.subr.mxu0 0.0
  %613 = vmatpush1.msra.mxu0 0.0
  %614 = vmatprep.subr.mxu0 0.0
  %615 = vmatpush1.msra.mxu0 0.0
  %616 = vmatprep.subr.mxu0 0.0
  %617 = vmatpush1.msra.mxu0 0.0
  %618 = vmatprep.subr.mxu0 0.0
  %619 = vmatpush1.msra.mxu0 0.0
  %620 = vmatprep.subr.mxu0 0.0
  %621 = vmatpush1.msra.mxu0 0.0
  %622 = vmatprep.subr.mxu0 0.0
  %623 = vmatpush1.msra.mxu0 0.0
  %624 = vmatprep.subr.mxu0 0.0
  %625 = vmatpush1.msra.mxu0 0.0
  %626 = vmatprep.subr.mxu0 0.0
  %627 = vmatpush1.msra.mxu0 0.0
  %628 = vmatprep.subr.mxu0 0.0
  %629 = vmatpush1.msra.mxu0 0.0
  %630 = vmatprep.subr.mxu0 0.0
  %631 = vmatpush1.msra.mxu0 0.0
  %632 = vmatprep.subr.mxu0 0.0
  %633 = vmatpush1.msra.mxu0 0.0
  %634 = vmatprep.subr.mxu0 0.0
  %635 = vmatpush1.msra.mxu0 %v35
  %636 = vmatprep.subr.mxu0 0.0
  %637 = vmatpush1.msra.mxu0 %v34
  %638 = vmatprep.subr.mxu0 0.0
  %639 = vmatpush1.msra.mxu0 %v33
  %640 = vmatprep.subr.mxu0 0.0
  %641 = vmatpush1.msra.mxu0 %v32
  %642 = vmatprep.subr.mxu0 0.0
  %643 = vmatpush2.msra.mxu0 0.0
  %644 = vmatprep.subr.mxu0 0.0
  %645 = vmatpush2.msra.mxu0 0.0
  %646 = vmatprep.subr.mxu0 0.0
  %647 = vmatpush2.msra.mxu0 0.0
  %648 = vmatprep.subr.mxu0 0.0
  %649 = vmatpush2.msra.mxu0 0.0
  %650 = vmatprep.subr.mxu0 0.0
  %651 = vmatpush2.msra.mxu0 0.0
  %652 = vmatprep.subr.mxu0 0.0
  %653 = vmatpush2.msra.mxu0 0.0
  %654 = vmatprep.subr.mxu0 0.0
  %655 = vmatpush2.msra.mxu0 0.0
  %656 = vmatprep.subr.mxu0 0.0
  %657 = vmatpush2.msra.mxu0 0.0
  %658 = vmatprep.subr.mxu0 0.0
  %659 = vmatpush2.msra.mxu0 0.0
  %660 = vmatprep.subr.mxu0 0.0
  %661 = vmatpush2.msra.mxu0 0.0
  %662 = vmatprep.subr.mxu0 0.0
  %663 = vmatpush2.msra.mxu0 0.0
  %664 = vmatprep.subr.mxu0 0.0
  %665 = vmatpush2.msra.mxu0 0.0
  %666 = vmatprep.subr.mxu0 0.0
  %667 = vmatpush2.msra.mxu0 0.0
  %668 = vmatprep.subr.mxu0 0.0
  %669 = vmatpush2.msra.mxu0 0.0
  %670 = vmatprep.subr.mxu0 0.0
  %671 = vmatpush2.msra.mxu0 0.0
  %672 = vmatprep.subr.mxu0 0.0
  %673 = vmatpush2.msra.mxu0 0.0
  %674 = vmatprep.mubr.f32.mxu0 0.0
  %675 = vmatmul.mubr.f32.gmra.mxu0 %v506
  %v676 = vpop.f32.mrf.mxu0
  %v677 = vadd.f32 0.0, %v676
  %v678 = vpop.f32.mrf.mxu0
  %679 = vdwg.mxu0
  %v680 = vadd.f32 %v609, %v677
  %v681 = vtanh.pop %v680
  %v682 = vmul.f32 %v681, 0.5
  %v683 = vadd.f32 %v682, 0.5
  %v684 = vsel %vm31, %v681, %v683
  %v685 = vmul.f32 %v684, %v427
  %687 = vrot.lane.b32.xlu0 %v684, 64
  %v688 = vpop.permute.xlu0 %687
  %v690 = vmul.f32 %v684, %v688
  %692 = vrot.lane.b32.xlu0 %v690, 32
  %v693 = vpop.permute.xlu0 %692
  %v695 = vadd.f32 %v685, %v693
  %v696 = vtanh.pop %v695
  %698 = vrot.lane.b32.xlu0 %v696, 64
  %v699 = vpop.permute.xlu0 %698
  %v701 = vmul.f32 %v684, %v699
  %v702 = vsel %vm607, %v701, %v426
  %v703 = vsel %vm607, %v695, %v427
  %705 = vrot.lane.b32.xlu0 %v600, 32
  %v706 = vpop.permute.xlu0 %705
  %v707 = vsel %vm59, %v706, 0
  %709 = vmatprep.subr.mxu0 0.0
  %710 = vmatpush1.msra.mxu0 0.0
  %711 = vmatprep.subr.mxu0 0.0
  %712 = vmatpush1.msra.mxu0 0.0
  %713 = vmatprep.subr.mxu0 0.0
  %714 = vmatpush1.msra.mxu0 0.0
  %715 = vmatprep.subr.mxu0 0.0
  %716 = vmatpush1.msra.mxu0 0.0
  %717 = vmatprep.subr.mxu0 0.0
  %718 = vmatpush1.msra.mxu0 0.0
  %719 = vmatprep.subr.mxu0 0.0
  %720 = vmatpush1.msra.mxu0 0.0
  %721 = vmatprep.subr.mxu0 0.0
  %722 = vmatpush1.msra.mxu0 0.0
  %723 = vmatprep.subr.mxu0 0.0
  %724 = vmatpush1.msra.mxu0 0.0
  %725 = vmatprep.subr.mxu0 0.0
  %726 = vmatpush1.msra.mxu0 0.0
  %727 = vmatprep.subr.mxu0 0.0
  %728 = vmatpush1.msra.mxu0 0.0
  %729 = vmatprep.subr.mxu0 0.0
  %730 = vmatpush1.msra.mxu0 0.0
  %731 = vmatprep.subr.mxu0 0.0
  %732 = vmatpush1.msra.mxu0 0.0
  %733 = vmatprep.subr.mxu0 0.0
  %734 = vmatpush1.msra.mxu0 %v40
  %735 = vmatprep.subr.mxu0 0.0
  %736 = vmatpush1.msra.mxu0 %v39
  %737 = vmatprep.subr.mxu0 0.0
  %738 = vmatpush1.msra.mxu0 %v38
  %739 = vmatprep.subr.mxu0 0.0
  %740 = vmatpush1.msra.mxu0 %v37
  %741 = vmatprep.subr.mxu0 0.0
  %742 = vmatpush2.msra.mxu0 0.0
  %743 = vmatprep.subr.mxu0 0.0
  %744 = vmatpush2.msra.mxu0 0.0
  %745 = vmatprep.subr.mxu0 0.0
  %746 = vmatpush2.msra.mxu0 0.0
  %747 = vmatprep.subr.mxu0 0.0
  %748 = vmatpush2.msra.mxu0 0.0
  %749 = vmatprep.subr.mxu0 0.0
  %750 = vmatpush2.msra.mxu0 0.0
  %751 = vmatprep.subr.mxu0 0.0
  %752 = vmatpush2.msra.mxu0 0.0
  %753 = vmatprep.subr.mxu0 0.0
  %754 = vmatpush2.msra.mxu0 0.0
  %755 = vmatprep.subr.mxu0 0.0
  %756 = vmatpush2.msra.mxu0 0.0
  %757 = vmatprep.subr.mxu0 0.0
  %758 = vmatpush2.msra.mxu0 0.0
  %759 = vmatprep.subr.mxu0 0.0
  %760 = vmatpush2.msra.mxu0 0.0
  %761 = vmatprep.subr.mxu0 0.0
  %762 = vmatpush2.msra.mxu0 0.0
  %763 = vmatprep.subr.mxu0 0.0
  %764 = vmatpush2.msra.mxu0 0.0
  %765 = vmatprep.subr.mxu0 0.0
  %766 = vmatpush2.msra.mxu0 0.0
  %767 = vmatprep.subr.mxu0 0.0
  %768 = vmatpush2.msra.mxu0 0.0
  %769 = vmatprep.subr.mxu0 0.0
  %770 = vmatpush2.msra.mxu0 0.0
  %771 = vmatprep.subr.mxu0 0.0
  %772 = vmatpush2.msra.mxu0 0.0
  %773 = vmatprep.mubr.f32.mxu0 0.0
  %774 = vmatmul.mubr.f32.gmra.mxu0 %v707
  %v775 = vpop.f32.mrf.mxu0
  %v776 = vadd.f32 0.0, %v775
  %v777 = vpop.f32.mrf.mxu0
  %778 = vdwg.mxu0
  %780 = vrot.lane.b32.xlu0 %v702, 32
  %v781 = vpop.permute.xlu0 %780
  %v782 = vsel %vm59, %v781, 0
  %784 = vmatprep.subr.mxu0 0.0
  %785 = vmatpush1.msra.mxu0 0.0
  %786 = vmatprep.subr.mxu0 0.0
  %787 = vmatpush1.msra.mxu0 0.0
  %788 = vmatprep.subr.mxu0 0.0
  %789 = vmatpush1.msra.mxu0 0.0
  %790 = vmatprep.subr.mxu0 0.0
  %791 = vmatpush1.msra.mxu0 0.0
  %792 = vmatprep.subr.mxu0 0.0
  %793 = vmatpush1.msra.mxu0 0.0
  %794 = vmatprep.subr.mxu0 0.0
  %795 = vmatpush1.msra.mxu0 0.0
  %796 = vmatprep.subr.mxu0 0.0
  %797 = vmatpush1.msra.mxu0 0.0
  %798 = vmatprep.subr.mxu0 0.0
  %799 = vmatpush1.msra.mxu0 0.0
  %800 = vmatprep.subr.mxu0 0.0
  %801 = vmatpush1.msra.mxu0 0.0
  %802 = vmatprep.subr.mxu0 0.0
  %803 = vmatpush1.msra.mxu0 0.0
  %804 = vmatprep.subr.mxu0 0.0
  %805 = vmatpush1.msra.mxu0 0.0
  %806 = vmatprep.subr.mxu0 0.0
  %807 = vmatpush1.msra.mxu0 0.0
  %808 = vmatprep.subr.mxu0 0.0
  %809 = vmatpush1.msra.mxu0 %v44
  %810 = vmatprep.subr.mxu0 0.0
  %811 = vmatpush1.msra.mxu0 %v43
  %812 = vmatprep.subr.mxu0 0.0
  %813 = vmatpush1.msra.mxu0 %v42
  %814 = vmatprep.subr.mxu0 0.0
  %815 = vmatpush1.msra.mxu0 %v41
  %816 = vmatprep.subr.mxu0 0.0
  %817 = vmatpush2.msra.mxu0 0.0
  %818 = vmatprep.subr.mxu0 0.0
  %819 = vmatpush2.msra.mxu0 0.0
  %820 = vmatprep.subr.mxu0 0.0
  %821 = vmatpush2.msra.mxu0 0.0
  %822 = vmatprep.subr.mxu0 0.0
  %823 = vmatpush2.msra.mxu0 0.0
  %824 = vmatprep.subr.mxu0 0.0
  %825 = vmatpush2.msra.mxu0 0.0
  %826 = vmatprep.subr.mxu0 0.0
  %827 = vmatpush2.msra.mxu0 0.0
  %828 = vmatprep.subr.mxu0 0.0
  %829 = vmatpush2.msra.mxu0 0.0
  %830 = vmatprep.subr.mxu0 0.0
  %831 = vmatpush2.msra.mxu0 0.0
  %832 = vmatprep.subr.mxu0 0.0
  %833 = vmatpush2.msra.mxu0 0.0
  %834 = vmatprep.subr.mxu0 0.0
  %835 = vmatpush2.msra.mxu0 0.0
  %836 = vmatprep.subr.mxu0 0.0
  %837 = vmatpush2.msra.mxu0 0.0
  %838 = vmatprep.subr.mxu0 0.0
  %839 = vmatpush2.msra.mxu0 0.0
  %840 = vmatprep.subr.mxu0 0.0
  %841 = vmatpush2.msra.mxu0 0.0
  %842 = vmatprep.subr.mxu0 0.0
  %843 = vmatpush2.msra.mxu0 0.0
  %844 = vmatprep.subr.mxu0 0.0
  %845 = vmatpush2.msra.mxu0 0.0
  %846 = vmatprep.subr.mxu0 0.0
  %847 = vmatpush2.msra.mxu0 0.0
  %848 = vmatprep.mubr.f32.mxu0 0.0
  %849 = vmatmul.mubr.f32.gmra.mxu0 %v782
  %v850 = vpop.f32.mrf.mxu0
  %v851 = vadd.f32 %v776, %v850
  %v852 = vpop.f32.mrf.mxu0
  %853 = vdwg.mxu0
  %v854 = vadd.f32 %v851, %v50
  %v855 = vtanh.pop %v854
  %v856 = vmul.f32 %v855, 0.5
  %v857 = vadd.f32 %v856, 0.5
  %v858 = vsel %vm31, %v855, %v857
  %v859 = vmul.f32 %v858, %v601
  %861 = vrot.lane.b32.xlu0 %v858, 64
  %v862 = vpop.permute.xlu0 %861
  %v864 = vmul.f32 %v858, %v862
  %866 = vrot.lane.b32.xlu0 %v864, 32
  %v867 = vpop.permute.xlu0 %866
  %v869 = vadd.f32 %v859, %v867
  %v870 = vtanh.pop %v869
  %872 = vrot.lane.b32.xlu0 %v870, 64
  %v873 = vpop.permute.xlu0 %872
  %v875 = vmul.f32 %v858, %v873
  %v876 = vsel %vm607, %v875, %v600
  %v877 = vsel %vm607, %v869, %v601
  %vm878 = vcmp.gt.s32.totalorder %v26, 3
  %v879 = vsel %vm878, 1, 0
  %880 = vset.pattern.permute.xlu0 0
  %881 = vperm.xlu0 %880, %v879
  %v882 = vpop.permute.xlu0 %881
  %vm883 = vcmp.eq.s32.totalorder %v882, 1
  %s884 = scalar_lea.vmem %s1, 24
  %v885 = vld [vmem:[%s884] sm:$0xff]
  %886 = vmatprep.subr.mxu0 0.0
  %887 = vmatpush1.msra.mxu0 0.0
  %888 = vmatprep.subr.mxu0 0.0
  %889 = vmatpush1.msra.mxu0 0.0
  %890 = vmatprep.subr.mxu0 0.0
  %891 = vmatpush1.msra.mxu0 0.0
  %892 = vmatprep.subr.mxu0 0.0
  %893 = vmatpush1.msra.mxu0 0.0
  %894 = vmatprep.subr.mxu0 0.0
  %895 = vmatpush1.msra.mxu0 0.0
  %896 = vmatprep.subr.mxu0 0.0
  %897 = vmatpush1.msra.mxu0 0.0
  %898 = vmatprep.subr.mxu0 0.0
  %899 = vmatpush1.msra.mxu0 0.0
  %900 = vmatprep.subr.mxu0 0.0
  %901 = vmatpush1.msra.mxu0 0.0
  %902 = vmatprep.subr.mxu0 0.0
  %903 = vmatpush1.msra.mxu0 0.0
  %904 = vmatprep.subr.mxu0 0.0
  %905 = vmatpush1.msra.mxu0 0.0
  %906 = vmatprep.subr.mxu0 0.0
  %907 = vmatpush1.msra.mxu0 0.0
  %908 = vmatprep.subr.mxu0 0.0
  %909 = vmatpush1.msra.mxu0 0.0
  %910 = vmatprep.subr.mxu0 0.0
  %911 = vmatpush1.msra.mxu0 %v35
  %912 = vmatprep.subr.mxu0 0.0
  %913 = vmatpush1.msra.mxu0 %v34
  %914 = vmatprep.subr.mxu0 0.0
  %915 = vmatpush1.msra.mxu0 %v33
  %916 = vmatprep.subr.mxu0 0.0
  %917 = vmatpush1.msra.mxu0 %v32
  %918 = vmatprep.subr.mxu0 0.0
  %919 = vmatpush2.msra.mxu0 0.0
  %920 = vmatprep.subr.mxu0 0.0
  %921 = vmatpush2.msra.mxu0 0.0
  %922 = vmatprep.subr.mxu0 0.0
  %923 = vmatpush2.msra.mxu0 0.0
  %924 = vmatprep.subr.mxu0 0.0
  %925 = vmatpush2.msra.mxu0 0.0
  %926 = vmatprep.subr.mxu0 0.0
  %927 = vmatpush2.msra.mxu0 0.0
  %928 = vmatprep.subr.mxu0 0.0
  %929 = vmatpush2.msra.mxu0 0.0
  %930 = vmatprep.subr.mxu0 0.0
  %931 = vmatpush2.msra.mxu0 0.0
  %932 = vmatprep.subr.mxu0 0.0
  %933 = vmatpush2.msra.mxu0 0.0
  %934 = vmatprep.subr.mxu0 0.0
  %935 = vmatpush2.msra.mxu0 0.0
  %936 = vmatprep.subr.mxu0 0.0
  %937 = vmatpush2.msra.mxu0 0.0
  %938 = vmatprep.subr.mxu0 0.0
  %939 = vmatpush2.msra.mxu0 0.0
  %940 = vmatprep.subr.mxu0 0.0
  %941 = vmatpush2.msra.mxu0 0.0
  %942 = vmatprep.subr.mxu0 0.0
  %943 = vmatpush2.msra.mxu0 0.0
  %944 = vmatprep.subr.mxu0 0.0
  %945 = vmatpush2.msra.mxu0 0.0
  %946 = vmatprep.subr.mxu0 0.0
  %947 = vmatpush2.msra.mxu0 0.0
  %948 = vmatprep.subr.mxu0 0.0
  %949 = vmatpush2.msra.mxu0 0.0
  %950 = vmatprep.mubr.f32.mxu0 0.0
  %951 = vmatmul.mubr.f32.gmra.mxu0 %v782
  %v952 = vpop.f32.mrf.mxu0
  %v953 = vadd.f32 0.0, %v952
  %v954 = vpop.f32.mrf.mxu0
  %955 = vdwg.mxu0
  %v956 = vadd.f32 %v885, %v953
  %v957 = vtanh.pop %v956
  %v958 = vmul.f32 %v957, 0.5
  %v959 = vadd.f32 %v958, 0.5
  %v960 = vsel %vm31, %v957, %v959
  %v961 = vmul.f32 %v960, %v703
  %963 = vrot.lane.b32.xlu0 %v960, 64
  %v964 = vpop.permute.xlu0 %963
  %v966 = vmul.f32 %v960, %v964
  %968 = vrot.lane.b32.xlu0 %v966, 32
  %v969 = vpop.permute.xlu0 %968
  %v971 = vadd.f32 %v961, %v969
  %v972 = vtanh.pop %v971
  %974 = vrot.lane.b32.xlu0 %v972, 64
  %v975 = vpop.permute.xlu0 %974
  %v977 = vmul.f32 %v960, %v975
  %v978 = vsel %vm883, %v977, %v702
  %v979 = vsel %vm883, %v971, %v703
  %981 = vrot.lane.b32.xlu0 %v876, 32
  %v982 = vpop.permute.xlu0 %981
  %v983 = vsel %vm59, %v982, 0
  %985 = vmatprep.subr.mxu0 0.0
  %986 = vmatpush1.msra.mxu0 0.0
  %987 = vmatprep.subr.mxu0 0.0
  %988 = vmatpush1.msra.mxu0 0.0
  %989 = vmatprep.subr.mxu0 0.0
  %990 = vmatpush1.msra.mxu0 0.0
  %991 = vmatprep.subr.mxu0 0.0
  %992 = vmatpush1.msra.mxu0 0.0
  %993 = vmatprep.subr.mxu0 0.0
  %994 = vmatpush1.msra.mxu0 0.0
  %995 = vmatprep.subr.mxu0 0.0
  %996 = vmatpush1.msra.mxu0 0.0
  %997 = vmatprep.subr.mxu0 0.0
  %998 = vmatpush1.msra.mxu0 0.0
  %999 = vmatprep.subr.mxu0 0.0
  %1000 = vmatpush1.msra.mxu0 0.0
  %1001 = vmatprep.subr.mxu0 0.0
  %1002 = vmatpush1.msra.mxu0 0.0
  %1003 = vmatprep.subr.mxu0 0.0
  %1004 = vmatpush1.msra.mxu0 0.0
  %1005 = vmatprep.subr.mxu0 0.0
  %1006 = vmatpush1.msra.mxu0 0.0
  %1007 = vmatprep.subr.mxu0 0.0
  %1008 = vmatpush1.msra.mxu0 0.0
  %1009 = vmatprep.subr.mxu0 0.0
  %1010 = vmatpush1.msra.mxu0 %v40
  %1011 = vmatprep.subr.mxu0 0.0
  %1012 = vmatpush1.msra.mxu0 %v39
  %1013 = vmatprep.subr.mxu0 0.0
  %1014 = vmatpush1.msra.mxu0 %v38
  %1015 = vmatprep.subr.mxu0 0.0
  %1016 = vmatpush1.msra.mxu0 %v37
  %1017 = vmatprep.subr.mxu0 0.0
  %1018 = vmatpush2.msra.mxu0 0.0
  %1019 = vmatprep.subr.mxu0 0.0
  %1020 = vmatpush2.msra.mxu0 0.0
  %1021 = vmatprep.subr.mxu0 0.0
  %1022 = vmatpush2.msra.mxu0 0.0
  %1023 = vmatprep.subr.mxu0 0.0
  %1024 = vmatpush2.msra.mxu0 0.0
  %1025 = vmatprep.subr.mxu0 0.0
  %1026 = vmatpush2.msra.mxu0 0.0
  %1027 = vmatprep.subr.mxu0 0.0
  %1028 = vmatpush2.msra.mxu0 0.0
  %1029 = vmatprep.subr.mxu0 0.0
  %1030 = vmatpush2.msra.mxu0 0.0
  %1031 = vmatprep.subr.mxu0 0.0
  %1032 = vmatpush2.msra.mxu0 0.0
  %1033 = vmatprep.subr.mxu0 0.0
  %1034 = vmatpush2.msra.mxu0 0.0
  %1035 = vmatprep.subr.mxu0 0.0
  %1036 = vmatpush2.msra.mxu0 0.0
  %1037 = vmatprep.subr.mxu0 0.0
  %1038 = vmatpush2.msra.mxu0 0.0
  %1039 = vmatprep.subr.mxu0 0.0
  %1040 = vmatpush2.msra.mxu0 0.0
  %1041 = vmatprep.subr.mxu0 0.0
  %1042 = vmatpush2.msra.mxu0 0.0
  %1043 = vmatprep.subr.mxu0 0.0
  %1044 = vmatpush2.msra.mxu0 0.0
  %1045 = vmatprep.subr.mxu0 0.0
  %1046 = vmatpush2.msra.mxu0 0.0
  %1047 = vmatprep.subr.mxu0 0.0
  %1048 = vmatpush2.msra.mxu0 0.0
  %1049 = vmatprep.mubr.f32.mxu0 0.0
  %1050 = vmatmul.mubr.f32.gmra.mxu0 %v983
  %v1051 = vpop.f32.mrf.mxu0
  %v1052 = vadd.f32 0.0, %v1051
  %v1053 = vpop.f32.mrf.mxu0
  %1054 = vdwg.mxu0
  %1056 = vrot.lane.b32.xlu0 %v978, 32
  %v1057 = vpop.permute.xlu0 %1056
  %v1058 = vsel %vm59, %v1057, 0
  %1060 = vmatprep.subr.mxu0 0.0
  %1061 = vmatpush1.msra.mxu0 0.0
  %1062 = vmatprep.subr.mxu0 0.0
  %1063 = vmatpush1.msra.mxu0 0.0
  %1064 = vmatprep.subr.mxu0 0.0
  %1065 = vmatpush1.msra.mxu0 0.0
  %1066 = vmatprep.subr.mxu0 0.0
  %1067 = vmatpush1.msra.mxu0 0.0
  %1068 = vmatprep.subr.mxu0 0.0
  %1069 = vmatpush1.msra.mxu0 0.0
  %1070 = vmatprep.subr.mxu0 0.0
  %1071 = vmatpush1.msra.mxu0 0.0
  %1072 = vmatprep.subr.mxu0 0.0
  %1073 = vmatpush1.msra.mxu0 0.0
  %1074 = vmatprep.subr.mxu0 0.0
  %1075 = vmatpush1.msra.mxu0 0.0
  %1076 = vmatprep.subr.mxu0 0.0
  %1077 = vmatpush1.msra.mxu0 0.0
  %1078 = vmatprep.subr.mxu0 0.0
  %1079 = vmatpush1.msra.mxu0 0.0
  %1080 = vmatprep.subr.mxu0 0.0
  %1081 = vmatpush1.msra.mxu0 0.0
  %1082 = vmatprep.subr.mxu0 0.0
  %1083 = vmatpush1.msra.mxu0 0.0
  %1084 = vmatprep.subr.mxu0 0.0
  %1085 = vmatpush1.msra.mxu0 %v44
  %1086 = vmatprep.subr.mxu0 0.0
  %1087 = vmatpush1.msra.mxu0 %v43
  %1088 = vmatprep.subr.mxu0 0.0
  %1089 = vmatpush1.msra.mxu0 %v42
  %1090 = vmatprep.subr.mxu0 0.0
  %1091 = vmatpush1.msra.mxu0 %v41
  %1092 = vmatprep.subr.mxu0 0.0
  %1093 = vmatpush2.msra.mxu0 0.0
  %1094 = vmatprep.subr.mxu0 0.0
  %1095 = vmatpush2.msra.mxu0 0.0
  %1096 = vmatprep.subr.mxu0 0.0
  %1097 = vmatpush2.msra.mxu0 0.0
  %1098 = vmatprep.subr.mxu0 0.0
  %1099 = vmatpush2.msra.mxu0 0.0
  %1100 = vmatprep.subr.mxu0 0.0
  %1101 = vmatpush2.msra.mxu0 0.0
  %1102 = vmatprep.subr.mxu0 0.0
  %1103 = vmatpush2.msra.mxu0 0.0
  %1104 = vmatprep.subr.mxu0 0.0
  %1105 = vmatpush2.msra.mxu0 0.0
  %1106 = vmatprep.subr.mxu0 0.0
  %1107 = vmatpush2.msra.mxu0 0.0
  %1108 = vmatprep.subr.mxu0 0.0
  %1109 = vmatpush2.msra.mxu0 0.0
  %1110 = vmatprep.subr.mxu0 0.0
  %1111 = vmatpush2.msra.mxu0 0.0
  %1112 = vmatprep.subr.mxu0 0.0
  %1113 = vmatpush2.msra.mxu0 0.0
  %1114 = vmatprep.subr.mxu0 0.0
  %1115 = vmatpush2.msra.mxu0 0.0
  %1116 = vmatprep.subr.mxu0 0.0
  %1117 = vmatpush2.msra.mxu0 0.0
  %1118 = vmatprep.subr.mxu0 0.0
  %1119 = vmatpush2.msra.mxu0 0.0
  %1120 = vmatprep.subr.mxu0 0.0
  %1121 = vmatpush2.msra.mxu0 0.0
  %1122 = vmatprep.subr.mxu0 0.0
  %1123 = vmatpush2.msra.mxu0 0.0
  %1124 = vmatprep.mubr.f32.mxu0 0.0
  %1125 = vmatmul.mubr.f32.gmra.mxu0 %v1058
  %v1126 = vpop.f32.mrf.mxu0
  %v1127 = vadd.f32 %v1052, %v1126
  %v1128 = vpop.f32.mrf.mxu0
  %1129 = vdwg.mxu0
  %v1130 = vadd.f32 %v1127, %v50
  %v1131 = vtanh.pop %v1130
  %v1132 = vmul.f32 %v1131, 0.5
  %v1133 = vadd.f32 %v1132, 0.5
  %v1134 = vsel %vm31, %v1131, %v1133
  %v1135 = vmul.f32 %v1134, %v877
  %1137 = vrot.lane.b32.xlu0 %v1134, 64
  %v1138 = vpop.permute.xlu0 %1137
  %v1140 = vmul.f32 %v1134, %v1138
  %1142 = vrot.lane.b32.xlu0 %v1140, 32
  %v1143 = vpop.permute.xlu0 %1142
  %v1145 = vadd.f32 %v1135, %v1143
  %v1146 = vtanh.pop %v1145
  %1148 = vrot.lane.b32.xlu0 %v1146, 64
  %v1149 = vpop.permute.xlu0 %1148
  %v1151 = vmul.f32 %v1134, %v1149
  %v1152 = vsel %vm883, %v1151, %v876
  %v1153 = vsel %vm883, %v1145, %v877
  %vm1154 = vcmp.gt.s32.totalorder %v26, 4
  %v1155 = vsel %vm1154, 1, 0
  %1156 = vset.pattern.permute.xlu0 0
  %1157 = vperm.xlu0 %1156, %v1155
  %v1158 = vpop.permute.xlu0 %1157
  %vm1159 = vcmp.eq.s32.totalorder %v1158, 1
  %s1160 = scalar_lea.vmem %s1, 32
  %v1161 = vld [vmem:[%s1160] sm:$0xff]
  %1162 = vmatprep.subr.mxu0 0.0
  %1163 = vmatpush1.msra.mxu0 0.0
  %1164 = vmatprep.subr.mxu0 0.0
  %1165 = vmatpush1.msra.mxu0 0.0
  %1166 = vmatprep.subr.mxu0 0.0
  %1167 = vmatpush1.msra.mxu0 0.0
  %1168 = vmatprep.subr.mxu0 0.0
  %1169 = vmatpush1.msra.mxu0 0.0
  %1170 = vmatprep.subr.mxu0 0.0
  %1171 = vmatpush1.msra.mxu0 0.0
  %1172 = vmatprep.subr.mxu0 0.0
  %1173 = vmatpush1.msra.mxu0 0.0
  %1174 = vmatprep.subr.mxu0 0.0
  %1175 = vmatpush1.msra.mxu0 0.0
  %1176 = vmatprep.subr.mxu0 0.0
  %1177 = vmatpush1.msra.mxu0 0.0
  %1178 = vmatprep.subr.mxu0 0.0
  %1179 = vmatpush1.msra.mxu0 0.0
  %1180 = vmatprep.subr.mxu0 0.0
  %1181 = vmatpush1.msra.mxu0 0.0
  %1182 = vmatprep.subr.mxu0 0.0
  %1183 = vmatpush1.msra.mxu0 0.0
  %1184 = vmatprep.subr.mxu0 0.0
  %1185 = vmatpush1.msra.mxu0 0.0
  %1186 = vmatprep.subr.mxu0 0.0
  %1187 = vmatpush1.msra.mxu0 %v35
  %1188 = vmatprep.subr.mxu0 0.0
  %1189 = vmatpush1.msra.mxu0 %v34
  %1190 = vmatprep.subr.mxu0 0.0
  %1191 = vmatpush1.msra.mxu0 %v33
  %1192 = vmatprep.subr.mxu0 0.0
  %1193 = vmatpush1.msra.mxu0 %v32
  %1194 = vmatprep.subr.mxu0 0.0
  %1195 = vmatpush2.msra.mxu0 0.0
  %1196 = vmatprep.subr.mxu0 0.0
  %1197 = vmatpush2.msra.mxu0 0.0
  %1198 = vmatprep.subr.mxu0 0.0
  %1199 = vmatpush2.msra.mxu0 0.0
  %1200 = vmatprep.subr.mxu0 0.0
  %1201 = vmatpush2.msra.mxu0 0.0
  %1202 = vmatprep.subr.mxu0 0.0
  %1203 = vmatpush2.msra.mxu0 0.0
  %1204 = vmatprep.subr.mxu0 0.0
  %1205 = vmatpush2.msra.mxu0 0.0
  %1206 = vmatprep.subr.mxu0 0.0
  %1207 = vmatpush2.msra.mxu0 0.0
  %1208 = vmatprep.subr.mxu0 0.0
  %1209 = vmatpush2.msra.mxu0 0.0
  %1210 = vmatprep.subr.mxu0 0.0
  %1211 = vmatpush2.msra.mxu0 0.0
  %1212 = vmatprep.subr.mxu0 0.0
  %1213 = vmatpush2.msra.mxu0 0.0
  %1214 = vmatprep.subr.mxu0 0.0
  %1215 = vmatpush2.msra.mxu0 0.0
  %1216 = vmatprep.subr.mxu0 0.0
  %1217 = vmatpush2.msra.mxu0 0.0
  %1218 = vmatprep.subr.mxu0 0.0
  %1219 = vmatpush2.msra.mxu0 0.0
  %1220 = vmatprep.subr.mxu0 0.0
  %1221 = vmatpush2.msra.mxu0 0.0
  %1222 = vmatprep.subr.mxu0 0.0
  %1223 = vmatpush2.msra.mxu0 0.0
  %1224 = vmatprep.subr.mxu0 0.0
  %1225 = vmatpush2.msra.mxu0 0.0
  %1226 = vmatprep.mubr.f32.mxu0 0.0
  %1227 = vmatmul.mubr.f32.gmra.mxu0 %v1058
  %v1228 = vpop.f32.mrf.mxu0
  %v1229 = vadd.f32 0.0, %v1228
  %v1230 = vpop.f32.mrf.mxu0
  %1231 = vdwg.mxu0
  %v1232 = vadd.f32 %v1161, %v1229
  %v1233 = vtanh.pop %v1232
  %v1234 = vmul.f32 %v1233, 0.5
  %v1235 = vadd.f32 %v1234, 0.5
  %v1236 = vsel %vm31, %v1233, %v1235
  %v1237 = vmul.f32 %v1236, %v979
  %1239 = vrot.lane.b32.xlu0 %v1236, 64
  %v1240 = vpop.permute.xlu0 %1239
  %v1242 = vmul.f32 %v1236, %v1240
  %1244 = vrot.lane.b32.xlu0 %v1242, 32
  %v1245 = vpop.permute.xlu0 %1244
  %v1247 = vadd.f32 %v1237, %v1245
  %v1248 = vtanh.pop %v1247
  %1250 = vrot.lane.b32.xlu0 %v1248, 64
  %v1251 = vpop.permute.xlu0 %1250
  %v1253 = vmul.f32 %v1236, %v1251
  %v1254 = vsel %vm1159, %v1253, %v978
  %v1255 = vsel %vm1159, %v1247, %v979
  %1257 = vrot.lane.b32.xlu0 %v1152, 32
  %v1258 = vpop.permute.xlu0 %1257
  %v1259 = vsel %vm59, %v1258, 0
  %1261 = vmatprep.subr.mxu0 0.0
  %1262 = vmatpush1.msra.mxu0 0.0
  %1263 = vmatprep.subr.mxu0 0.0
  %1264 = vmatpush1.msra.mxu0 0.0
  %1265 = vmatprep.subr.mxu0 0.0
  %1266 = vmatpush1.msra.mxu0 0.0
  %1267 = vmatprep.subr.mxu0 0.0
  %1268 = vmatpush1.msra.mxu0 0.0
  %1269 = vmatprep.subr.mxu0 0.0
  %1270 = vmatpush1.msra.mxu0 0.0
  %1271 = vmatprep.subr.mxu0 0.0
  %1272 = vmatpush1.msra.mxu0 0.0
  %1273 = vmatprep.subr.mxu0 0.0
  %1274 = vmatpush1.msra.mxu0 0.0
  %1275 = vmatprep.subr.mxu0 0.0
  %1276 = vmatpush1.msra.mxu0 0.0
  %1277 = vmatprep.subr.mxu0 0.0
  %1278 = vmatpush1.msra.mxu0 0.0
  %1279 = vmatprep.subr.mxu0 0.0
  %1280 = vmatpush1.msra.mxu0 0.0
  %1281 = vmatprep.subr.mxu0 0.0
  %1282 = vmatpush1.msra.mxu0 0.0
  %1283 = vmatprep.subr.mxu0 0.0
  %1284 = vmatpush1.msra.mxu0 0.0
  %1285 = vmatprep.subr.mxu0 0.0
  %1286 = vmatpush1.msra.mxu0 %v40
  %1287 = vmatprep.subr.mxu0 0.0
  %1288 = vmatpush1.msra.mxu0 %v39
  %1289 = vmatprep.subr.mxu0 0.0
  %1290 = vmatpush1.msra.mxu0 %v38
  %1291 = vmatprep.subr.mxu0 0.0
  %1292 = vmatpush1.msra.mxu0 %v37
  %1293 = vmatprep.subr.mxu0 0.0
  %1294 = vmatpush2.msra.mxu0 0.0
  %1295 = vmatprep.subr.mxu0 0.0
  %1296 = vmatpush2.msra.mxu0 0.0
  %1297 = vmatprep.subr.mxu0 0.0
  %1298 = vmatpush2.msra.mxu0 0.0
  %1299 = vmatprep.subr.mxu0 0.0
  %1300 = vmatpush2.msra.mxu0 0.0
  %1301 = vmatprep.subr.mxu0 0.0
  %1302 = vmatpush2.msra.mxu0 0.0
  %1303 = vmatprep.subr.mxu0 0.0
  %1304 = vmatpush2.msra.mxu0 0.0
  %1305 = vmatprep.subr.mxu0 0.0
  %1306 = vmatpush2.msra.mxu0 0.0
  %1307 = vmatprep.subr.mxu0 0.0
  %1308 = vmatpush2.msra.mxu0 0.0
  %1309 = vmatprep.subr.mxu0 0.0
  %1310 = vmatpush2.msra.mxu0 0.0
  %1311 = vmatprep.subr.mxu0 0.0
  %1312 = vmatpush2.msra.mxu0 0.0
  %1313 = vmatprep.subr.mxu0 0.0
  %1314 = vmatpush2.msra.mxu0 0.0
  %1315 = vmatprep.subr.mxu0 0.0
  %1316 = vmatpush2.msra.mxu0 0.0
  %1317 = vmatprep.subr.mxu0 0.0
  %1318 = vmatpush2.msra.mxu0 0.0
  %1319 = vmatprep.subr.mxu0 0.0
  %1320 = vmatpush2.msra.mxu0 0.0
  %1321 = vmatprep.subr.mxu0 0.0
  %1322 = vmatpush2.msra.mxu0 0.0
  %1323 = vmatprep.subr.mxu0 0.0
  %1324 = vmatpush2.msra.mxu0 0.0
  %1325 = vmatprep.mubr.f32.mxu0 0.0
  %1326 = vmatmul.mubr.f32.gmra.mxu0 %v1259
  %v1327 = vpop.f32.mrf.mxu0
  %v1328 = vadd.f32 0.0, %v1327
  %v1329 = vpop.f32.mrf.mxu0
  %1330 = vdwg.mxu0
  %1332 = vrot.lane.b32.xlu0 %v1254, 32
  %v1333 = vpop.permute.xlu0 %1332
  %v1334 = vsel %vm59, %v1333, 0
  %1336 = vmatprep.subr.mxu0 0.0
  %1337 = vmatpush1.msra.mxu0 0.0
  %1338 = vmatprep.subr.mxu0 0.0
  %1339 = vmatpush1.msra.mxu0 0.0
  %1340 = vmatprep.subr.mxu0 0.0
  %1341 = vmatpush1.msra.mxu0 0.0
  %1342 = vmatprep.subr.mxu0 0.0
  %1343 = vmatpush1.msra.mxu0 0.0
  %1344 = vmatprep.subr.mxu0 0.0
  %1345 = vmatpush1.msra.mxu0 0.0
  %1346 = vmatprep.subr.mxu0 0.0
  %1347 = vmatpush1.msra.mxu0 0.0
  %1348 = vmatprep.subr.mxu0 0.0
  %1349 = vmatpush1.msra.mxu0 0.0
  %1350 = vmatprep.subr.mxu0 0.0
  %1351 = vmatpush1.msra.mxu0 0.0
  %1352 = vmatprep.subr.mxu0 0.0
  %1353 = vmatpush1.msra.mxu0 0.0
  %1354 = vmatprep.subr.mxu0 0.0
  %1355 = vmatpush1.msra.mxu0 0.0
  %1356 = vmatprep.subr.mxu0 0.0
  %1357 = vmatpush1.msra.mxu0 0.0
  %1358 = vmatprep.subr.mxu0 0.0
  %1359 = vmatpush1.msra.mxu0 0.0
  %1360 = vmatprep.subr.mxu0 0.0
  %1361 = vmatpush1.msra.mxu0 %v44
  %1362 = vmatprep.subr.mxu0 0.0
  %1363 = vmatpush1.msra.mxu0 %v43
  %1364 = vmatprep.subr.mxu0 0.0
  %1365 = vmatpush1.msra.mxu0 %v42
  %1366 = vmatprep.subr.mxu0 0.0
  %1367 = vmatpush1.msra.mxu0 %v41
  %1368 = vmatprep.subr.mxu0 0.0
  %1369 = vmatpush2.msra.mxu0 0.0
  %1370 = vmatprep.subr.mxu0 0.0
  %1371 = vmatpush2.msra.mxu0 0.0
  %1372 = vmatprep.subr.mxu0 0.0
  %1373 = vmatpush2.msra.mxu0 0.0
  %1374 = vmatprep.subr.mxu0 0.0
  %1375 = vmatpush2.msra.mxu0 0.0
  %1376 = vmatprep.subr.mxu0 0.0
  %1377 = vmatpush2.msra.mxu0 0.0
  %1378 = vmatprep.subr.mxu0 0.0
  %1379 = vmatpush2.msra.mxu0 0.0
  %1380 = vmatprep.subr.mxu0 0.0
  %1381 = vmatpush2.msra.mxu0 0.0
  %1382 = vmatprep.subr.mxu0 0.0
  %1383 = vmatpush2.msra.mxu0 0.0
  %1384 = vmatprep.subr.mxu0 0.0
  %1385 = vmatpush2.msra.mxu0 0.0
  %1386 = vmatprep.subr.mxu0 0.0
  %1387 = vmatpush2.msra.mxu0 0.0
  %1388 = vmatprep.subr.mxu0 0.0
  %1389 = vmatpush2.msra.mxu0 0.0
  %1390 = vmatprep.subr.mxu0 0.0
  %1391 = vmatpush2.msra.mxu0 0.0
  %1392 = vmatprep.subr.mxu0 0.0
  %1393 = vmatpush2.msra.mxu0 0.0
  %1394 = vmatprep.subr.mxu0 0.0
  %1395 = vmatpush2.msra.mxu0 0.0
  %1396 = vmatprep.subr.mxu0 0.0
  %1397 = vmatpush2.msra.mxu0 0.0
  %1398 = vmatprep.subr.mxu0 0.0
  %1399 = vmatpush2.msra.mxu0 0.0
  %1400 = vmatprep.mubr.f32.mxu0 0.0
  %1401 = vmatmul.mubr.f32.gmra.mxu0 %v1334
  %v1402 = vpop.f32.mrf.mxu0
  %v1403 = vadd.f32 %v1328, %v1402
  %v1404 = vpop.f32.mrf.mxu0
  %1405 = vdwg.mxu0
  %v1406 = vadd.f32 %v1403, %v50
  %v1407 = vtanh.pop %v1406
  %v1408 = vmul.f32 %v1407, 0.5
  %v1409 = vadd.f32 %v1408, 0.5
  %v1410 = vsel %vm31, %v1407, %v1409
  %v1411 = vmul.f32 %v1410, %v1153
  %1413 = vrot.lane.b32.xlu0 %v1410, 64
  %v1414 = vpop.permute.xlu0 %1413
  %v1416 = vmul.f32 %v1410, %v1414
  %1418 = vrot.lane.b32.xlu0 %v1416, 32
  %v1419 = vpop.permute.xlu0 %1418
  %v1421 = vadd.f32 %v1411, %v1419
  %v1422 = vtanh.pop %v1421
  %1424 = vrot.lane.b32.xlu0 %v1422, 64
  %v1425 = vpop.permute.xlu0 %1424
  %v1427 = vmul.f32 %v1410, %v1425
  %v1428 = vsel %vm1159, %v1427, %v1152
  %v1429 = vsel %vm1159, %v1421, %v1153
  %vm1430 = vcmp.gt.s32.totalorder %v26, 5
  %v1431 = vsel %vm1430, 1, 0
  %1432 = vset.pattern.permute.xlu0 0
  %1433 = vperm.xlu0 %1432, %v1431
  %v1434 = vpop.permute.xlu0 %1433
  %vm1435 = vcmp.eq.s32.totalorder %v1434, 1
  %s1436 = scalar_lea.vmem %s1, 40
  %v1437 = vld [vmem:[%s1436] sm:$0xff]
  %1438 = vmatprep.subr.mxu0 0.0
  %1439 = vmatpush1.msra.mxu0 0.0
  %1440 = vmatprep.subr.mxu0 0.0
  %1441 = vmatpush1.msra.mxu0 0.0
  %1442 = vmatprep.subr.mxu0 0.0
  %1443 = vmatpush1.msra.mxu0 0.0
  %1444 = vmatprep.subr.mxu0 0.0
  %1445 = vmatpush1.msra.mxu0 0.0
  %1446 = vmatprep.subr.mxu0 0.0
  %1447 = vmatpush1.msra.mxu0 0.0
  %1448 = vmatprep.subr.mxu0 0.0
  %1449 = vmatpush1.msra.mxu0 0.0
  %1450 = vmatprep.subr.mxu0 0.0
  %1451 = vmatpush1.msra.mxu0 0.0
  %1452 = vmatprep.subr.mxu0 0.0
  %1453 = vmatpush1.msra.mxu0 0.0
  %1454 = vmatprep.subr.mxu0 0.0
  %1455 = vmatpush1.msra.mxu0 0.0
  %1456 = vmatprep.subr.mxu0 0.0
  %1457 = vmatpush1.msra.mxu0 0.0
  %1458 = vmatprep.subr.mxu0 0.0
  %1459 = vmatpush1.msra.mxu0 0.0
  %1460 = vmatprep.subr.mxu0 0.0
  %1461 = vmatpush1.msra.mxu0 0.0
  %1462 = vmatprep.subr.mxu0 0.0
  %1463 = vmatpush1.msra.mxu0 %v35
  %1464 = vmatprep.subr.mxu0 0.0
  %1465 = vmatpush1.msra.mxu0 %v34
  %1466 = vmatprep.subr.mxu0 0.0
  %1467 = vmatpush1.msra.mxu0 %v33
  %1468 = vmatprep.subr.mxu0 0.0
  %1469 = vmatpush1.msra.mxu0 %v32
  %1470 = vmatprep.subr.mxu0 0.0
  %1471 = vmatpush2.msra.mxu0 0.0
  %1472 = vmatprep.subr.mxu0 0.0
  %1473 = vmatpush2.msra.mxu0 0.0
  %1474 = vmatprep.subr.mxu0 0.0
  %1475 = vmatpush2.msra.mxu0 0.0
  %1476 = vmatprep.subr.mxu0 0.0
  %1477 = vmatpush2.msra.mxu0 0.0
  %1478 = vmatprep.subr.mxu0 0.0
  %1479 = vmatpush2.msra.mxu0 0.0
  %1480 = vmatprep.subr.mxu0 0.0
  %1481 = vmatpush2.msra.mxu0 0.0
  %1482 = vmatprep.subr.mxu0 0.0
  %1483 = vmatpush2.msra.mxu0 0.0
  %1484 = vmatprep.subr.mxu0 0.0
  %1485 = vmatpush2.msra.mxu0 0.0
  %1486 = vmatprep.subr.mxu0 0.0
  %1487 = vmatpush2.msra.mxu0 0.0
  %1488 = vmatprep.subr.mxu0 0.0
  %1489 = vmatpush2.msra.mxu0 0.0
  %1490 = vmatprep.subr.mxu0 0.0
  %1491 = vmatpush2.msra.mxu0 0.0
  %1492 = vmatprep.subr.mxu0 0.0
  %1493 = vmatpush2.msra.mxu0 0.0
  %1494 = vmatprep.subr.mxu0 0.0
  %1495 = vmatpush2.msra.mxu0 0.0
  %1496 = vmatprep.subr.mxu0 0.0
  %1497 = vmatpush2.msra.mxu0 0.0
  %1498 = vmatprep.subr.mxu0 0.0
  %1499 = vmatpush2.msra.mxu0 0.0
  %1500 = vmatprep.subr.mxu0 0.0
  %1501 = vmatpush2.msra.mxu0 0.0
  %1502 = vmatprep.mubr.f32.mxu0 0.0
  %1503 = vmatmul.mubr.f32.gmra.mxu0 %v1334
  %v1504 = vpop.f32.mrf.mxu0
  %v1505 = vadd.f32 0.0, %v1504
  %v1506 = vpop.f32.mrf.mxu0
  %1507 = vdwg.mxu0
  %v1508 = vadd.f32 %v1437, %v1505
  %v1509 = vtanh.pop %v1508
  %v1510 = vmul.f32 %v1509, 0.5
  %v1511 = vadd.f32 %v1510, 0.5
  %v1512 = vsel %vm31, %v1509, %v1511
  %v1513 = vmul.f32 %v1512, %v1255
  %1515 = vrot.lane.b32.xlu0 %v1512, 64
  %v1516 = vpop.permute.xlu0 %1515
  %v1518 = vmul.f32 %v1512, %v1516
  %1520 = vrot.lane.b32.xlu0 %v1518, 32
  %v1521 = vpop.permute.xlu0 %1520
  %v1523 = vadd.f32 %v1513, %v1521
  %v1524 = vtanh.pop %v1523
  %1526 = vrot.lane.b32.xlu0 %v1524, 64
  %v1527 = vpop.permute.xlu0 %1526
  %v1529 = vmul.f32 %v1512, %v1527
  %v1530 = vsel %vm1435, %v1529, %v1254
  %v1531 = vsel %vm1435, %v1523, %v1255
  %1533 = vrot.lane.b32.xlu0 %v1428, 32
  %v1534 = vpop.permute.xlu0 %1533
  %v1535 = vsel %vm59, %v1534, 0
  %1537 = vmatprep.subr.mxu0 0.0
  %1538 = vmatpush1.msra.mxu0 0.0
  %1539 = vmatprep.subr.mxu0 0.0
  %1540 = vmatpush1.msra.mxu0 0.0
  %1541 = vmatprep.subr.mxu0 0.0
  %1542 = vmatpush1.msra.mxu0 0.0
  %1543 = vmatprep.subr.mxu0 0.0
  %1544 = vmatpush1.msra.mxu0 0.0
  %1545 = vmatprep.subr.mxu0 0.0
  %1546 = vmatpush1.msra.mxu0 0.0
  %1547 = vmatprep.subr.mxu0 0.0
  %1548 = vmatpush1.msra.mxu0 0.0
  %1549 = vmatprep.subr.mxu0 0.0
  %1550 = vmatpush1.msra.mxu0 0.0
  %1551 = vmatprep.subr.mxu0 0.0
  %1552 = vmatpush1.msra.mxu0 0.0
  %1553 = vmatprep.subr.mxu0 0.0
  %1554 = vmatpush1.msra.mxu0 0.0
  %1555 = vmatprep.subr.mxu0 0.0
  %1556 = vmatpush1.msra.mxu0 0.0
  %1557 = vmatprep.subr.mxu0 0.0
  %1558 = vmatpush1.msra.mxu0 0.0
  %1559 = vmatprep.subr.mxu0 0.0
  %1560 = vmatpush1.msra.mxu0 0.0
  %1561 = vmatprep.subr.mxu0 0.0
  %1562 = vmatpush1.msra.mxu0 %v40
  %1563 = vmatprep.subr.mxu0 0.0
  %1564 = vmatpush1.msra.mxu0 %v39
  %1565 = vmatprep.subr.mxu0 0.0
  %1566 = vmatpush1.msra.mxu0 %v38
  %1567 = vmatprep.subr.mxu0 0.0
  %1568 = vmatpush1.msra.mxu0 %v37
  %1569 = vmatprep.subr.mxu0 0.0
  %1570 = vmatpush2.msra.mxu0 0.0
  %1571 = vmatprep.subr.mxu0 0.0
  %1572 = vmatpush2.msra.mxu0 0.0
  %1573 = vmatprep.subr.mxu0 0.0
  %1574 = vmatpush2.msra.mxu0 0.0
  %1575 = vmatprep.subr.mxu0 0.0
  %1576 = vmatpush2.msra.mxu0 0.0
  %1577 = vmatprep.subr.mxu0 0.0
  %1578 = vmatpush2.msra.mxu0 0.0
  %1579 = vmatprep.subr.mxu0 0.0
  %1580 = vmatpush2.msra.mxu0 0.0
  %1581 = vmatprep.subr.mxu0 0.0
  %1582 = vmatpush2.msra.mxu0 0.0
  %1583 = vmatprep.subr.mxu0 0.0
  %1584 = vmatpush2.msra.mxu0 0.0
  %1585 = vmatprep.subr.mxu0 0.0
  %1586 = vmatpush2.msra.mxu0 0.0
  %1587 = vmatprep.subr.mxu0 0.0
  %1588 = vmatpush2.msra.mxu0 0.0
  %1589 = vmatprep.subr.mxu0 0.0
  %1590 = vmatpush2.msra.mxu0 0.0
  %1591 = vmatprep.subr.mxu0 0.0
  %1592 = vmatpush2.msra.mxu0 0.0
  %1593 = vmatprep.subr.mxu0 0.0
  %1594 = vmatpush2.msra.mxu0 0.0
  %1595 = vmatprep.subr.mxu0 0.0
  %1596 = vmatpush2.msra.mxu0 0.0
  %1597 = vmatprep.subr.mxu0 0.0
  %1598 = vmatpush2.msra.mxu0 0.0
  %1599 = vmatprep.subr.mxu0 0.0
  %1600 = vmatpush2.msra.mxu0 0.0
  %1601 = vmatprep.mubr.f32.mxu0 0.0
  %1602 = vmatmul.mubr.f32.gmra.mxu0 %v1535
  %v1603 = vpop.f32.mrf.mxu0
  %v1604 = vadd.f32 0.0, %v1603
  %v1605 = vpop.f32.mrf.mxu0
  %1606 = vdwg.mxu0
  %1608 = vrot.lane.b32.xlu0 %v1530, 32
  %v1609 = vpop.permute.xlu0 %1608
  %v1610 = vsel %vm59, %v1609, 0
  %1612 = vmatprep.subr.mxu0 0.0
  %1613 = vmatpush1.msra.mxu0 0.0
  %1614 = vmatprep.subr.mxu0 0.0
  %1615 = vmatpush1.msra.mxu0 0.0
  %1616 = vmatprep.subr.mxu0 0.0
  %1617 = vmatpush1.msra.mxu0 0.0
  %1618 = vmatprep.subr.mxu0 0.0
  %1619 = vmatpush1.msra.mxu0 0.0
  %1620 = vmatprep.subr.mxu0 0.0
  %1621 = vmatpush1.msra.mxu0 0.0
  %1622 = vmatprep.subr.mxu0 0.0
  %1623 = vmatpush1.msra.mxu0 0.0
  %1624 = vmatprep.subr.mxu0 0.0
  %1625 = vmatpush1.msra.mxu0 0.0
  %1626 = vmatprep.subr.mxu0 0.0
  %1627 = vmatpush1.msra.mxu0 0.0
  %1628 = vmatprep.subr.mxu0 0.0
  %1629 = vmatpush1.msra.mxu0 0.0
  %1630 = vmatprep.subr.mxu0 0.0
  %1631 = vmatpush1.msra.mxu0 0.0
  %1632 = vmatprep.subr.mxu0 0.0
  %1633 = vmatpush1.msra.mxu0 0.0
  %1634 = vmatprep.subr.mxu0 0.0
  %1635 = vmatpush1.msra.mxu0 0.0
  %1636 = vmatprep.subr.mxu0 0.0
  %1637 = vmatpush1.msra.mxu0 %v44
  %1638 = vmatprep.subr.mxu0 0.0
  %1639 = vmatpush1.msra.mxu0 %v43
  %1640 = vmatprep.subr.mxu0 0.0
  %1641 = vmatpush1.msra.mxu0 %v42
  %1642 = vmatprep.subr.mxu0 0.0
  %1643 = vmatpush1.msra.mxu0 %v41
  %1644 = vmatprep.subr.mxu0 0.0
  %1645 = vmatpush2.msra.mxu0 0.0
  %1646 = vmatprep.subr.mxu0 0.0
  %1647 = vmatpush2.msra.mxu0 0.0
  %1648 = vmatprep.subr.mxu0 0.0
  %1649 = vmatpush2.msra.mxu0 0.0
  %1650 = vmatprep.subr.mxu0 0.0
  %1651 = vmatpush2.msra.mxu0 0.0
  %1652 = vmatprep.subr.mxu0 0.0
  %1653 = vmatpush2.msra.mxu0 0.0
  %1654 = vmatprep.subr.mxu0 0.0
  %1655 = vmatpush2.msra.mxu0 0.0
  %1656 = vmatprep.subr.mxu0 0.0
  %1657 = vmatpush2.msra.mxu0 0.0
  %1658 = vmatprep.subr.mxu0 0.0
  %1659 = vmatpush2.msra.mxu0 0.0
  %1660 = vmatprep.subr.mxu0 0.0
  %1661 = vmatpush2.msra.mxu0 0.0
  %1662 = vmatprep.subr.mxu0 0.0
  %1663 = vmatpush2.msra.mxu0 0.0
  %1664 = vmatprep.subr.mxu0 0.0
  %1665 = vmatpush2.msra.mxu0 0.0
  %1666 = vmatprep.subr.mxu0 0.0
  %1667 = vmatpush2.msra.mxu0 0.0
  %1668 = vmatprep.subr.mxu0 0.0
  %1669 = vmatpush2.msra.mxu0 0.0
  %1670 = vmatprep.subr.mxu0 0.0
  %1671 = vmatpush2.msra.mxu0 0.0
  %1672 = vmatprep.subr.mxu0 0.0
  %1673 = vmatpush2.msra.mxu0 0.0
  %1674 = vmatprep.subr.mxu0 0.0
  %1675 = vmatpush2.msra.mxu0 0.0
  %1676 = vmatprep.mubr.f32.mxu0 0.0
  %1677 = vmatmul.mubr.f32.gmra.mxu0 %v1610
  %v1678 = vpop.f32.mrf.mxu0
  %v1679 = vadd.f32 %v1604, %v1678
  %v1680 = vpop.f32.mrf.mxu0
  %1681 = vdwg.mxu0
  %v1682 = vadd.f32 %v1679, %v50
  %v1683 = vtanh.pop %v1682
  %v1684 = vmul.f32 %v1683, 0.5
  %v1685 = vadd.f32 %v1684, 0.5
  %v1686 = vsel %vm31, %v1683, %v1685
  %v1687 = vmul.f32 %v1686, %v1429
  %1689 = vrot.lane.b32.xlu0 %v1686, 64
  %v1690 = vpop.permute.xlu0 %1689
  %v1692 = vmul.f32 %v1686, %v1690
  %1694 = vrot.lane.b32.xlu0 %v1692, 32
  %v1695 = vpop.permute.xlu0 %1694
  %v1697 = vadd.f32 %v1687, %v1695
  %v1698 = vtanh.pop %v1697
  %1700 = vrot.lane.b32.xlu0 %v1698, 64
  %v1701 = vpop.permute.xlu0 %1700
  %v1703 = vmul.f32 %v1686, %v1701
  %v1704 = vsel %vm1435, %v1703, %v1428
  %v1705 = vsel %vm1435, %v1697, %v1429
  %vm1706 = vcmp.gt.s32.totalorder %v26, 6
  %v1707 = vsel %vm1706, 1, 0
  %1708 = vset.pattern.permute.xlu0 0
  %1709 = vperm.xlu0 %1708, %v1707
  %v1710 = vpop.permute.xlu0 %1709
  %vm1711 = vcmp.eq.s32.totalorder %v1710, 1
  %s1712 = scalar_lea.vmem %s1, 48
  %v1713 = vld [vmem:[%s1712] sm:$0xff]
  %1714 = vmatprep.subr.mxu0 0.0
  %1715 = vmatpush1.msra.mxu0 0.0
  %1716 = vmatprep.subr.mxu0 0.0
  %1717 = vmatpush1.msra.mxu0 0.0
  %1718 = vmatprep.subr.mxu0 0.0
  %1719 = vmatpush1.msra.mxu0 0.0
  %1720 = vmatprep.subr.mxu0 0.0
  %1721 = vmatpush1.msra.mxu0 0.0
  %1722 = vmatprep.subr.mxu0 0.0
  %1723 = vmatpush1.msra.mxu0 0.0
  %1724 = vmatprep.subr.mxu0 0.0
  %1725 = vmatpush1.msra.mxu0 0.0
  %1726 = vmatprep.subr.mxu0 0.0
  %1727 = vmatpush1.msra.mxu0 0.0
  %1728 = vmatprep.subr.mxu0 0.0
  %1729 = vmatpush1.msra.mxu0 0.0
  %1730 = vmatprep.subr.mxu0 0.0
  %1731 = vmatpush1.msra.mxu0 0.0
  %1732 = vmatprep.subr.mxu0 0.0
  %1733 = vmatpush1.msra.mxu0 0.0
  %1734 = vmatprep.subr.mxu0 0.0
  %1735 = vmatpush1.msra.mxu0 0.0
  %1736 = vmatprep.subr.mxu0 0.0
  %1737 = vmatpush1.msra.mxu0 0.0
  %1738 = vmatprep.subr.mxu0 0.0
  %1739 = vmatpush1.msra.mxu0 %v35
  %1740 = vmatprep.subr.mxu0 0.0
  %1741 = vmatpush1.msra.mxu0 %v34
  %1742 = vmatprep.subr.mxu0 0.0
  %1743 = vmatpush1.msra.mxu0 %v33
  %1744 = vmatprep.subr.mxu0 0.0
  %1745 = vmatpush1.msra.mxu0 %v32
  %1746 = vmatprep.subr.mxu0 0.0
  %1747 = vmatpush2.msra.mxu0 0.0
  %1748 = vmatprep.subr.mxu0 0.0
  %1749 = vmatpush2.msra.mxu0 0.0
  %1750 = vmatprep.subr.mxu0 0.0
  %1751 = vmatpush2.msra.mxu0 0.0
  %1752 = vmatprep.subr.mxu0 0.0
  %1753 = vmatpush2.msra.mxu0 0.0
  %1754 = vmatprep.subr.mxu0 0.0
  %1755 = vmatpush2.msra.mxu0 0.0
  %1756 = vmatprep.subr.mxu0 0.0
  %1757 = vmatpush2.msra.mxu0 0.0
  %1758 = vmatprep.subr.mxu0 0.0
  %1759 = vmatpush2.msra.mxu0 0.0
  %1760 = vmatprep.subr.mxu0 0.0
  %1761 = vmatpush2.msra.mxu0 0.0
  %1762 = vmatprep.subr.mxu0 0.0
  %1763 = vmatpush2.msra.mxu0 0.0
  %1764 = vmatprep.subr.mxu0 0.0
  %1765 = vmatpush2.msra.mxu0 0.0
  %1766 = vmatprep.subr.mxu0 0.0
  %1767 = vmatpush2.msra.mxu0 0.0
  %1768 = vmatprep.subr.mxu0 0.0
  %1769 = vmatpush2.msra.mxu0 0.0
  %1770 = vmatprep.subr.mxu0 0.0
  %1771 = vmatpush2.msra.mxu0 0.0
  %1772 = vmatprep.subr.mxu0 0.0
  %1773 = vmatpush2.msra.mxu0 0.0
  %1774 = vmatprep.subr.mxu0 0.0
  %1775 = vmatpush2.msra.mxu0 0.0
  %1776 = vmatprep.subr.mxu0 0.0
  %1777 = vmatpush2.msra.mxu0 0.0
  %1778 = vmatprep.mubr.f32.mxu0 0.0
  %1779 = vmatmul.mubr.f32.gmra.mxu0 %v1610
  %v1780 = vpop.f32.mrf.mxu0
  %v1781 = vadd.f32 0.0, %v1780
  %v1782 = vpop.f32.mrf.mxu0
  %1783 = vdwg.mxu0
  %v1784 = vadd.f32 %v1713, %v1781
  %v1785 = vtanh.pop %v1784
  %v1786 = vmul.f32 %v1785, 0.5
  %v1787 = vadd.f32 %v1786, 0.5
  %v1788 = vsel %vm31, %v1785, %v1787
  %v1789 = vmul.f32 %v1788, %v1531
  %1791 = vrot.lane.b32.xlu0 %v1788, 64
  %v1792 = vpop.permute.xlu0 %1791
  %v1794 = vmul.f32 %v1788, %v1792
  %1796 = vrot.lane.b32.xlu0 %v1794, 32
  %v1797 = vpop.permute.xlu0 %1796
  %v1799 = vadd.f32 %v1789, %v1797
  %v1800 = vtanh.pop %v1799
  %1802 = vrot.lane.b32.xlu0 %v1800, 64
  %v1803 = vpop.permute.xlu0 %1802
  %v1805 = vmul.f32 %v1788, %v1803
  %v1806 = vsel %vm1711, %v1805, %v1530
  %v1807 = vsel %vm1711, %v1799, %v1531
  %1809 = vrot.lane.b32.xlu0 %v1704, 32
  %v1810 = vpop.permute.xlu0 %1809
  %v1811 = vsel %vm59, %v1810, 0
  %1813 = vmatprep.subr.mxu0 0.0
  %1814 = vmatpush1.msra.mxu0 0.0
  %1815 = vmatprep.subr.mxu0 0.0
  %1816 = vmatpush1.msra.mxu0 0.0
  %1817 = vmatprep.subr.mxu0 0.0
  %1818 = vmatpush1.msra.mxu0 0.0
  %1819 = vmatprep.subr.mxu0 0.0
  %1820 = vmatpush1.msra.mxu0 0.0
  %1821 = vmatprep.subr.mxu0 0.0
  %1822 = vmatpush1.msra.mxu0 0.0
  %1823 = vmatprep.subr.mxu0 0.0
  %1824 = vmatpush1.msra.mxu0 0.0
  %1825 = vmatprep.subr.mxu0 0.0
  %1826 = vmatpush1.msra.mxu0 0.0
  %1827 = vmatprep.subr.mxu0 0.0
  %1828 = vmatpush1.msra.mxu0 0.0
  %1829 = vmatprep.subr.mxu0 0.0
  %1830 = vmatpush1.msra.mxu0 0.0
  %1831 = vmatprep.subr.mxu0 0.0
  %1832 = vmatpush1.msra.mxu0 0.0
  %1833 = vmatprep.subr.mxu0 0.0
  %1834 = vmatpush1.msra.mxu0 0.0
  %1835 = vmatprep.subr.mxu0 0.0
  %1836 = vmatpush1.msra.mxu0 0.0
  %1837 = vmatprep.subr.mxu0 0.0
  %1838 = vmatpush1.msra.mxu0 %v40
  %1839 = vmatprep.subr.mxu0 0.0
  %1840 = vmatpush1.msra.mxu0 %v39
  %1841 = vmatprep.subr.mxu0 0.0
  %1842 = vmatpush1.msra.mxu0 %v38
  %1843 = vmatprep.subr.mxu0 0.0
  %1844 = vmatpush1.msra.mxu0 %v37
  %1845 = vmatprep.subr.mxu0 0.0
  %1846 = vmatpush2.msra.mxu0 0.0
  %1847 = vmatprep.subr.mxu0 0.0
  %1848 = vmatpush2.msra.mxu0 0.0
  %1849 = vmatprep.subr.mxu0 0.0
  %1850 = vmatpush2.msra.mxu0 0.0
  %1851 = vmatprep.subr.mxu0 0.0
  %1852 = vmatpush2.msra.mxu0 0.0
  %1853 = vmatprep.subr.mxu0 0.0
  %1854 = vmatpush2.msra.mxu0 0.0
  %1855 = vmatprep.subr.mxu0 0.0
  %1856 = vmatpush2.msra.mxu0 0.0
  %1857 = vmatprep.subr.mxu0 0.0
  %1858 = vmatpush2.msra.mxu0 0.0
  %1859 = vmatprep.subr.mxu0 0.0
  %1860 = vmatpush2.msra.mxu0 0.0
  %1861 = vmatprep.subr.mxu0 0.0
  %1862 = vmatpush2.msra.mxu0 0.0
  %1863 = vmatprep.subr.mxu0 0.0
  %1864 = vmatpush2.msra.mxu0 0.0
  %1865 = vmatprep.subr.mxu0 0.0
  %1866 = vmatpush2.msra.mxu0 0.0
  %1867 = vmatprep.subr.mxu0 0.0
  %1868 = vmatpush2.msra.mxu0 0.0
  %1869 = vmatprep.subr.mxu0 0.0
  %1870 = vmatpush2.msra.mxu0 0.0
  %1871 = vmatprep.subr.mxu0 0.0
  %1872 = vmatpush2.msra.mxu0 0.0
  %1873 = vmatprep.subr.mxu0 0.0
  %1874 = vmatpush2.msra.mxu0 0.0
  %1875 = vmatprep.subr.mxu0 0.0
  %1876 = vmatpush2.msra.mxu0 0.0
  %1877 = vmatprep.mubr.f32.mxu0 0.0
  %1878 = vmatmul.mubr.f32.gmra.mxu0 %v1811
  %v1879 = vpop.f32.mrf.mxu0
  %v1880 = vadd.f32 0.0, %v1879
  %v1881 = vpop.f32.mrf.mxu0
  %1882 = vdwg.mxu0
  %1884 = vrot.lane.b32.xlu0 %v1806, 32
  %v1885 = vpop.permute.xlu0 %1884
  %v1886 = vsel %vm59, %v1885, 0
  %1888 = vmatprep.subr.mxu0 0.0
  %1889 = vmatpush1.msra.mxu0 0.0
  %1890 = vmatprep.subr.mxu0 0.0
  %1891 = vmatpush1.msra.mxu0 0.0
  %1892 = vmatprep.subr.mxu0 0.0
  %1893 = vmatpush1.msra.mxu0 0.0
  %1894 = vmatprep.subr.mxu0 0.0
  %1895 = vmatpush1.msra.mxu0 0.0
  %1896 = vmatprep.subr.mxu0 0.0
  %1897 = vmatpush1.msra.mxu0 0.0
  %1898 = vmatprep.subr.mxu0 0.0
  %1899 = vmatpush1.msra.mxu0 0.0
  %1900 = vmatprep.subr.mxu0 0.0
  %1901 = vmatpush1.msra.mxu0 0.0
  %1902 = vmatprep.subr.mxu0 0.0
  %1903 = vmatpush1.msra.mxu0 0.0
  %1904 = vmatprep.subr.mxu0 0.0
  %1905 = vmatpush1.msra.mxu0 0.0
  %1906 = vmatprep.subr.mxu0 0.0
  %1907 = vmatpush1.msra.mxu0 0.0
  %1908 = vmatprep.subr.mxu0 0.0
  %1909 = vmatpush1.msra.mxu0 0.0
  %1910 = vmatprep.subr.mxu0 0.0
  %1911 = vmatpush1.msra.mxu0 0.0
  %1912 = vmatprep.subr.mxu0 0.0
  %1913 = vmatpush1.msra.mxu0 %v44
  %1914 = vmatprep.subr.mxu0 0.0
  %1915 = vmatpush1.msra.mxu0 %v43
  %1916 = vmatprep.subr.mxu0 0.0
  %1917 = vmatpush1.msra.mxu0 %v42
  %1918 = vmatprep.subr.mxu0 0.0
  %1919 = vmatpush1.msra.mxu0 %v41
  %1920 = vmatprep.subr.mxu0 0.0
  %1921 = vmatpush2.msra.mxu0 0.0
  %1922 = vmatprep.subr.mxu0 0.0
  %1923 = vmatpush2.msra.mxu0 0.0
  %1924 = vmatprep.subr.mxu0 0.0
  %1925 = vmatpush2.msra.mxu0 0.0
  %1926 = vmatprep.subr.mxu0 0.0
  %1927 = vmatpush2.msra.mxu0 0.0
  %1928 = vmatprep.subr.mxu0 0.0
  %1929 = vmatpush2.msra.mxu0 0.0
  %1930 = vmatprep.subr.mxu0 0.0
  %1931 = vmatpush2.msra.mxu0 0.0
  %1932 = vmatprep.subr.mxu0 0.0
  %1933 = vmatpush2.msra.mxu0 0.0
  %1934 = vmatprep.subr.mxu0 0.0
  %1935 = vmatpush2.msra.mxu0 0.0
  %1936 = vmatprep.subr.mxu0 0.0
  %1937 = vmatpush2.msra.mxu0 0.0
  %1938 = vmatprep.subr.mxu0 0.0
  %1939 = vmatpush2.msra.mxu0 0.0
  %1940 = vmatprep.subr.mxu0 0.0
  %1941 = vmatpush2.msra.mxu0 0.0
  %1942 = vmatprep.subr.mxu0 0.0
  %1943 = vmatpush2.msra.mxu0 0.0
  %1944 = vmatprep.subr.mxu0 0.0
  %1945 = vmatpush2.msra.mxu0 0.0
  %1946 = vmatprep.subr.mxu0 0.0
  %1947 = vmatpush2.msra.mxu0 0.0
  %1948 = vmatprep.subr.mxu0 0.0
  %1949 = vmatpush2.msra.mxu0 0.0
  %1950 = vmatprep.subr.mxu0 0.0
  %1951 = vmatpush2.msra.mxu0 0.0
  %1952 = vmatprep.mubr.f32.mxu0 0.0
  %1953 = vmatmul.mubr.f32.gmra.mxu0 %v1886
  %v1954 = vpop.f32.mrf.mxu0
  %v1955 = vadd.f32 %v1880, %v1954
  %v1956 = vpop.f32.mrf.mxu0
  %1957 = vdwg.mxu0
  %v1958 = vadd.f32 %v1955, %v50
  %v1959 = vtanh.pop %v1958
  %v1960 = vmul.f32 %v1959, 0.5
  %v1961 = vadd.f32 %v1960, 0.5
  %v1962 = vsel %vm31, %v1959, %v1961
  %v1963 = vmul.f32 %v1962, %v1705
  %1965 = vrot.lane.b32.xlu0 %v1962, 64
  %v1966 = vpop.permute.xlu0 %1965
  %v1968 = vmul.f32 %v1962, %v1966
  %1970 = vrot.lane.b32.xlu0 %v1968, 32
  %v1971 = vpop.permute.xlu0 %1970
  %v1973 = vadd.f32 %v1963, %v1971
  %v1974 = vtanh.pop %v1973
  %1976 = vrot.lane.b32.xlu0 %v1974, 64
  %v1977 = vpop.permute.xlu0 %1976
  %v1979 = vmul.f32 %v1962, %v1977
  %v1980 = vsel %vm1711, %v1979, %v1704
  %v1981 = vsel %vm1711, %v1973, %v1705
  %vm1982 = vcmp.gt.s32.totalorder %v26, 7
  %v1983 = vsel %vm1982, 1, 0
  %1984 = vset.pattern.permute.xlu0 0
  %1985 = vperm.xlu0 %1984, %v1983
  %v1986 = vpop.permute.xlu0 %1985
  %vm1987 = vcmp.eq.s32.totalorder %v1986, 1
  %s1988 = scalar_lea.vmem %s1, 56
  %v1989 = vld [vmem:[%s1988] sm:$0xff]
  %1990 = vmatprep.subr.mxu0 0.0
  %1991 = vmatpush1.msra.mxu0 0.0
  %1992 = vmatprep.subr.mxu0 0.0
  %1993 = vmatpush1.msra.mxu0 0.0
  %1994 = vmatprep.subr.mxu0 0.0
  %1995 = vmatpush1.msra.mxu0 0.0
  %1996 = vmatprep.subr.mxu0 0.0
  %1997 = vmatpush1.msra.mxu0 0.0
  %1998 = vmatprep.subr.mxu0 0.0
  %1999 = vmatpush1.msra.mxu0 0.0
  %2000 = vmatprep.subr.mxu0 0.0
  %2001 = vmatpush1.msra.mxu0 0.0
  %2002 = vmatprep.subr.mxu0 0.0
  %2003 = vmatpush1.msra.mxu0 0.0
  %2004 = vmatprep.subr.mxu0 0.0
  %2005 = vmatpush1.msra.mxu0 0.0
  %2006 = vmatprep.subr.mxu0 0.0
  %2007 = vmatpush1.msra.mxu0 0.0
  %2008 = vmatprep.subr.mxu0 0.0
  %2009 = vmatpush1.msra.mxu0 0.0
  %2010 = vmatprep.subr.mxu0 0.0
  %2011 = vmatpush1.msra.mxu0 0.0
  %2012 = vmatprep.subr.mxu0 0.0
  %2013 = vmatpush1.msra.mxu0 0.0
  %2014 = vmatprep.subr.mxu0 0.0
  %2015 = vmatpush1.msra.mxu0 %v35
  %2016 = vmatprep.subr.mxu0 0.0
  %2017 = vmatpush1.msra.mxu0 %v34
  %2018 = vmatprep.subr.mxu0 0.0
  %2019 = vmatpush1.msra.mxu0 %v33
  %2020 = vmatprep.subr.mxu0 0.0
  %2021 = vmatpush1.msra.mxu0 %v32
  %2022 = vmatprep.subr.mxu0 0.0
  %2023 = vmatpush2.msra.mxu0 0.0
  %2024 = vmatprep.subr.mxu0 0.0
  %2025 = vmatpush2.msra.mxu0 0.0
  %2026 = vmatprep.subr.mxu0 0.0
  %2027 = vmatpush2.msra.mxu0 0.0
  %2028 = vmatprep.subr.mxu0 0.0
  %2029 = vmatpush2.msra.mxu0 0.0
  %2030 = vmatprep.subr.mxu0 0.0
  %2031 = vmatpush2.msra.mxu0 0.0
  %2032 = vmatprep.subr.mxu0 0.0
  %2033 = vmatpush2.msra.mxu0 0.0
  %2034 = vmatprep.subr.mxu0 0.0
  %2035 = vmatpush2.msra.mxu0 0.0
  %2036 = vmatprep.subr.mxu0 0.0
  %2037 = vmatpush2.msra.mxu0 0.0
  %2038 = vmatprep.subr.mxu0 0.0
  %2039 = vmatpush2.msra.mxu0 0.0
  %2040 = vmatprep.subr.mxu0 0.0
  %2041 = vmatpush2.msra.mxu0 0.0
  %2042 = vmatprep.subr.mxu0 0.0
  %2043 = vmatpush2.msra.mxu0 0.0
  %2044 = vmatprep.subr.mxu0 0.0
  %2045 = vmatpush2.msra.mxu0 0.0
  %2046 = vmatprep.subr.mxu0 0.0
  %2047 = vmatpush2.msra.mxu0 0.0
  %2048 = vmatprep.subr.mxu0 0.0
  %2049 = vmatpush2.msra.mxu0 0.0
  %2050 = vmatprep.subr.mxu0 0.0
  %2051 = vmatpush2.msra.mxu0 0.0
  %2052 = vmatprep.subr.mxu0 0.0
  %2053 = vmatpush2.msra.mxu0 0.0
  %2054 = vmatprep.mubr.f32.mxu0 0.0
  %2055 = vmatmul.mubr.f32.gmra.mxu0 %v1886
  %v2056 = vpop.f32.mrf.mxu0
  %v2057 = vadd.f32 0.0, %v2056
  %v2058 = vpop.f32.mrf.mxu0
  %2059 = vdwg.mxu0
  %v2060 = vadd.f32 %v1989, %v2057
  %v2061 = vtanh.pop %v2060
  %v2062 = vmul.f32 %v2061, 0.5
  %v2063 = vadd.f32 %v2062, 0.5
  %v2064 = vsel %vm31, %v2061, %v2063
  %v2065 = vmul.f32 %v2064, %v1807
  %2067 = vrot.lane.b32.xlu0 %v2064, 64
  %v2068 = vpop.permute.xlu0 %2067
  %v2070 = vmul.f32 %v2064, %v2068
  %2072 = vrot.lane.b32.xlu0 %v2070, 32
  %v2073 = vpop.permute.xlu0 %2072
  %v2075 = vadd.f32 %v2065, %v2073
  %v2076 = vtanh.pop %v2075
  %2078 = vrot.lane.b32.xlu0 %v2076, 64
  %v2079 = vpop.permute.xlu0 %2078
  %v2081 = vmul.f32 %v2064, %v2079
  %v2082 = vsel %vm1987, %v2081, %v1806
  %2084 = vrot.lane.b32.xlu0 %v1980, 32
  %v2085 = vpop.permute.xlu0 %2084
  %v2086 = vsel %vm59, %v2085, 0
  %2088 = vmatprep.subr.mxu0 0.0
  %2089 = vmatpush1.msra.mxu0 0.0
  %2090 = vmatprep.subr.mxu0 0.0
  %2091 = vmatpush1.msra.mxu0 0.0
  %2092 = vmatprep.subr.mxu0 0.0
  %2093 = vmatpush1.msra.mxu0 0.0
  %2094 = vmatprep.subr.mxu0 0.0
  %2095 = vmatpush1.msra.mxu0 0.0
  %2096 = vmatprep.subr.mxu0 0.0
  %2097 = vmatpush1.msra.mxu0 0.0
  %2098 = vmatprep.subr.mxu0 0.0
  %2099 = vmatpush1.msra.mxu0 0.0
  %2100 = vmatprep.subr.mxu0 0.0
  %2101 = vmatpush1.msra.mxu0 0.0
  %2102 = vmatprep.subr.mxu0 0.0
  %2103 = vmatpush1.msra.mxu0 0.0
  %2104 = vmatprep.subr.mxu0 0.0
  %2105 = vmatpush1.msra.mxu0 0.0
  %2106 = vmatprep.subr.mxu0 0.0
  %2107 = vmatpush1.msra.mxu0 0.0
  %2108 = vmatprep.subr.mxu0 0.0
  %2109 = vmatpush1.msra.mxu0 0.0
  %2110 = vmatprep.subr.mxu0 0.0
  %2111 = vmatpush1.msra.mxu0 0.0
  %2112 = vmatprep.subr.mxu0 0.0
  %2113 = vmatpush1.msra.mxu0 %v40
  %2114 = vmatprep.subr.mxu0 0.0
  %2115 = vmatpush1.msra.mxu0 %v39
  %2116 = vmatprep.subr.mxu0 0.0
  %2117 = vmatpush1.msra.mxu0 %v38
  %2118 = vmatprep.subr.mxu0 0.0
  %2119 = vmatpush1.msra.mxu0 %v37
  %2120 = vmatprep.subr.mxu0 0.0
  %2121 = vmatpush2.msra.mxu0 0.0
  %2122 = vmatprep.subr.mxu0 0.0
  %2123 = vmatpush2.msra.mxu0 0.0
  %2124 = vmatprep.subr.mxu0 0.0
  %2125 = vmatpush2.msra.mxu0 0.0
  %2126 = vmatprep.subr.mxu0 0.0
  %2127 = vmatpush2.msra.mxu0 0.0
  %2128 = vmatprep.subr.mxu0 0.0
  %2129 = vmatpush2.msra.mxu0 0.0
  %2130 = vmatprep.subr.mxu0 0.0
  %2131 = vmatpush2.msra.mxu0 0.0
  %2132 = vmatprep.subr.mxu0 0.0
  %2133 = vmatpush2.msra.mxu0 0.0
  %2134 = vmatprep.subr.mxu0 0.0
  %2135 = vmatpush2.msra.mxu0 0.0
  %2136 = vmatprep.subr.mxu0 0.0
  %2137 = vmatpush2.msra.mxu0 0.0
  %2138 = vmatprep.subr.mxu0 0.0
  %2139 = vmatpush2.msra.mxu0 0.0
  %2140 = vmatprep.subr.mxu0 0.0
  %2141 = vmatpush2.msra.mxu0 0.0
  %2142 = vmatprep.subr.mxu0 0.0
  %2143 = vmatpush2.msra.mxu0 0.0
  %2144 = vmatprep.subr.mxu0 0.0
  %2145 = vmatpush2.msra.mxu0 0.0
  %2146 = vmatprep.subr.mxu0 0.0
  %2147 = vmatpush2.msra.mxu0 0.0
  %2148 = vmatprep.subr.mxu0 0.0
  %2149 = vmatpush2.msra.mxu0 0.0
  %2150 = vmatprep.subr.mxu0 0.0
  %2151 = vmatpush2.msra.mxu0 0.0
  %2152 = vmatprep.mubr.f32.mxu0 0.0
  %2153 = vmatmul.mubr.f32.gmra.mxu0 %v2086
  %v2154 = vpop.f32.mrf.mxu0
  %v2155 = vadd.f32 0.0, %v2154
  %v2156 = vpop.f32.mrf.mxu0
  %2157 = vdwg.mxu0
  %2159 = vrot.lane.b32.xlu0 %v2082, 32
  %v2160 = vpop.permute.xlu0 %2159
  %v2161 = vsel %vm59, %v2160, 0
  %2163 = vmatprep.subr.mxu0 0.0
  %2164 = vmatpush1.msra.mxu0 0.0
  %2165 = vmatprep.subr.mxu0 0.0
  %2166 = vmatpush1.msra.mxu0 0.0
  %2167 = vmatprep.subr.mxu0 0.0
  %2168 = vmatpush1.msra.mxu0 0.0
  %2169 = vmatprep.subr.mxu0 0.0
  %2170 = vmatpush1.msra.mxu0 0.0
  %2171 = vmatprep.subr.mxu0 0.0
  %2172 = vmatpush1.msra.mxu0 0.0
  %2173 = vmatprep.subr.mxu0 0.0
  %2174 = vmatpush1.msra.mxu0 0.0
  %2175 = vmatprep.subr.mxu0 0.0
  %2176 = vmatpush1.msra.mxu0 0.0
  %2177 = vmatprep.subr.mxu0 0.0
  %2178 = vmatpush1.msra.mxu0 0.0
  %2179 = vmatprep.subr.mxu0 0.0
  %2180 = vmatpush1.msra.mxu0 0.0
  %2181 = vmatprep.subr.mxu0 0.0
  %2182 = vmatpush1.msra.mxu0 0.0
  %2183 = vmatprep.subr.mxu0 0.0
  %2184 = vmatpush1.msra.mxu0 0.0
  %2185 = vmatprep.subr.mxu0 0.0
  %2186 = vmatpush1.msra.mxu0 0.0
  %2187 = vmatprep.subr.mxu0 0.0
  %2188 = vmatpush1.msra.mxu0 %v44
  %2189 = vmatprep.subr.mxu0 0.0
  %2190 = vmatpush1.msra.mxu0 %v43
  %2191 = vmatprep.subr.mxu0 0.0
  %2192 = vmatpush1.msra.mxu0 %v42
  %2193 = vmatprep.subr.mxu0 0.0
  %2194 = vmatpush1.msra.mxu0 %v41
  %2195 = vmatprep.subr.mxu0 0.0
  %2196 = vmatpush2.msra.mxu0 0.0
  %2197 = vmatprep.subr.mxu0 0.0
  %2198 = vmatpush2.msra.mxu0 0.0
  %2199 = vmatprep.subr.mxu0 0.0
  %2200 = vmatpush2.msra.mxu0 0.0
  %2201 = vmatprep.subr.mxu0 0.0
  %2202 = vmatpush2.msra.mxu0 0.0
  %2203 = vmatprep.subr.mxu0 0.0
  %2204 = vmatpush2.msra.mxu0 0.0
  %2205 = vmatprep.subr.mxu0 0.0
  %2206 = vmatpush2.msra.mxu0 0.0
  %2207 = vmatprep.subr.mxu0 0.0
  %2208 = vmatpush2.msra.mxu0 0.0
  %2209 = vmatprep.subr.mxu0 0.0
  %2210 = vmatpush2.msra.mxu0 0.0
  %2211 = vmatprep.subr.mxu0 0.0
  %2212 = vmatpush2.msra.mxu0 0.0
  %2213 = vmatprep.subr.mxu0 0.0
  %2214 = vmatpush2.msra.mxu0 0.0
  %2215 = vmatprep.subr.mxu0 0.0
  %2216 = vmatpush2.msra.mxu0 0.0
  %2217 = vmatprep.subr.mxu0 0.0
  %2218 = vmatpush2.msra.mxu0 0.0
  %2219 = vmatprep.subr.mxu0 0.0
  %2220 = vmatpush2.msra.mxu0 0.0
  %2221 = vmatprep.subr.mxu0 0.0
  %2222 = vmatpush2.msra.mxu0 0.0
  %2223 = vmatprep.subr.mxu0 0.0
  %2224 = vmatpush2.msra.mxu0 0.0
  %2225 = vmatprep.subr.mxu0 0.0
  %2226 = vmatpush2.msra.mxu0 0.0
  %2227 = vmatprep.mubr.f32.mxu0 0.0
  %2228 = vmatmul.mubr.f32.gmra.mxu0 %v2161
  %v2229 = vpop.f32.mrf.mxu0
  %v2230 = vadd.f32 %v2155, %v2229
  %v2231 = vpop.f32.mrf.mxu0
  %2232 = vdwg.mxu0
  %v2233 = vadd.f32 %v2230, %v50
  %v2234 = vtanh.pop %v2233
  %v2235 = vmul.f32 %v2234, 0.5
  %v2236 = vadd.f32 %v2235, 0.5
  %v2237 = vsel %vm31, %v2234, %v2236
  %v2238 = vmul.f32 %v2237, %v1981
  %2240 = vrot.lane.b32.xlu0 %v2237, 64
  %v2241 = vpop.permute.xlu0 %2240
  %v2243 = vmul.f32 %v2237, %v2241
  %2245 = vrot.lane.b32.xlu0 %v2243, 32
  %v2246 = vpop.permute.xlu0 %2245
  %v2248 = vadd.f32 %v2238, %v2246
  %v2249 = vtanh.pop %v2248
  %2251 = vrot.lane.b32.xlu0 %v2249, 64
  %v2252 = vpop.permute.xlu0 %2251
  %v2254 = vmul.f32 %v2237, %v2252
  %v2255 = vsel %vm1987, %v2254, %v1980
  %v2256 = vmax.f32 %v2255, 0.0
  %v2257 = vld [vmem:[%s5] sm:$0xff]
  %v2258 = vld [vmem:[%s5 + $0x8] sm:$0xff]
  %v2259 = vld [vmem:[%s5 + $0x10] sm:$0xff]
  %v2260 = vld [vmem:[%s5 + $0x18] sm:$0xff]
  %v2261 = vld [vmem:[%s6] sm:$0x1]
  %v2263 = vlaneseq
  %v2264 = vshrl.u32 %v2263, 7
  %v2265 = vsub.s32 0, %v2264
  %v2266 = vrot.slane %v2261, %v2265
  %2269 = vrot.lane.b32.xlu0 %v2256, 32
  %v2270 = vpop.permute.xlu0 %2269
  %v2271 = vsel %vm59, %v2270, 0
  %2273 = vmatprep.subr.mxu0 0.0
  %2274 = vmatpush1.msra.mxu0 0.0
  %2275 = vmatprep.subr.mxu0 0.0
  %2276 = vmatpush1.msra.mxu0 0.0
  %2277 = vmatprep.subr.mxu0 0.0
  %2278 = vmatpush1.msra.mxu0 0.0
  %2279 = vmatprep.subr.mxu0 0.0
  %2280 = vmatpush1.msra.mxu0 0.0
  %2281 = vmatprep.subr.mxu0 0.0
  %2282 = vmatpush1.msra.mxu0 0.0
  %2283 = vmatprep.subr.mxu0 0.0
  %2284 = vmatpush1.msra.mxu0 0.0
  %2285 = vmatprep.subr.mxu0 0.0
  %2286 = vmatpush1.msra.mxu0 0.0
  %2287 = vmatprep.subr.mxu0 0.0
  %2288 = vmatpush1.msra.mxu0 0.0
  %2289 = vmatprep.subr.mxu0 0.0
  %2290 = vmatpush1.msra.mxu0 0.0
  %2291 = vmatprep.subr.mxu0 0.0
  %2292 = vmatpush1.msra.mxu0 0.0
  %2293 = vmatprep.subr.mxu0 0.0
  %2294 = vmatpush1.msra.mxu0 0.0
  %2295 = vmatprep.subr.mxu0 0.0
  %2296 = vmatpush1.msra.mxu0 0.0
  %2297 = vmatprep.subr.mxu0 0.0
  %2298 = vmatpush1.msra.mxu0 %v2260
  %2299 = vmatprep.subr.mxu0 0.0
  %2300 = vmatpush1.msra.mxu0 %v2259
  %2301 = vmatprep.subr.mxu0 0.0
  %2302 = vmatpush1.msra.mxu0 %v2258
  %2303 = vmatprep.subr.mxu0 0.0
  %2304 = vmatpush1.msra.mxu0 %v2257
  %2305 = vmatprep.subr.mxu0 0.0
  %2306 = vmatpush2.msra.mxu0 0.0
  %2307 = vmatprep.subr.mxu0 0.0
  %2308 = vmatpush2.msra.mxu0 0.0
  %2309 = vmatprep.subr.mxu0 0.0
  %2310 = vmatpush2.msra.mxu0 0.0
  %2311 = vmatprep.subr.mxu0 0.0
  %2312 = vmatpush2.msra.mxu0 0.0
  %2313 = vmatprep.subr.mxu0 0.0
  %2314 = vmatpush2.msra.mxu0 0.0
  %2315 = vmatprep.subr.mxu0 0.0
  %2316 = vmatpush2.msra.mxu0 0.0
  %2317 = vmatprep.subr.mxu0 0.0
  %2318 = vmatpush2.msra.mxu0 0.0
  %2319 = vmatprep.subr.mxu0 0.0
  %2320 = vmatpush2.msra.mxu0 0.0
  %2321 = vmatprep.subr.mxu0 0.0
  %2322 = vmatpush2.msra.mxu0 0.0
  %2323 = vmatprep.subr.mxu0 0.0
  %2324 = vmatpush2.msra.mxu0 0.0
  %2325 = vmatprep.subr.mxu0 0.0
  %2326 = vmatpush2.msra.mxu0 0.0
  %2327 = vmatprep.subr.mxu0 0.0
  %2328 = vmatpush2.msra.mxu0 0.0
  %2329 = vmatprep.subr.mxu0 0.0
  %2330 = vmatpush2.msra.mxu0 0.0
  %2331 = vmatprep.subr.mxu0 0.0
  %2332 = vmatpush2.msra.mxu0 0.0
  %2333 = vmatprep.subr.mxu0 0.0
  %2334 = vmatpush2.msra.mxu0 0.0
  %2335 = vmatprep.subr.mxu0 0.0
  %2336 = vmatpush2.msra.mxu0 0.0
  %2337 = vmatprep.mubr.f32.mxu0 0.0
  %2338 = vmatmul.mubr.f32.gmra.mxu0 %v2271
  %v2339 = vpop.f32.mrf.mxu0
  %v2340 = vadd.f32 %v2266, %v2339
  %v2341 = vpop.f32.mrf.mxu0
  %2342 = vdwg.mxu0
  %2343 = vst [vmem:[%s7] sm:$0xff] %v2340
  // Predicated region
  $region30: #{rtlstm_forward.1} parent=0 // pred_check
    _
  $region31: #{rtlstm_forward.1} parent=0 // pred_check_branch
    %2345 = sbr.rel (0) target = $region33
  $region32: #{rtlstm_forward.1} parent=0 // pred_region
    _
  $region33: #{rtlstm_forward.1} parent=0 // pred_fallthru
    _
  // Predicated region
  $region34: #{rtlstm_forward.1} parent=0 // pred_check
    _
  $region35: #{rtlstm_forward.1} parent=0 // pred_check_branch
    %2347 = sbr.rel (0) target = $region37
  $region36: #{rtlstm_forward.1} parent=0 // pred_region
    _
  $region37: #{rtlstm_forward.1} parent=0 // pred_fallthru
    _

</llo_original>
